<compile_context>
chip_gen: v7x
topology: tpu7x:2x2x1
jax: 0.10.0
libtpu: 0.0.40
codegen_flags: <defaults>
</compile_context>

<pallas_src>
import jax
import jax.numpy as jnp
from jax.experimental import pallas as pl
from jax.experimental.pallas import tpu as pltpu

_LANE = 128


def _block_kernel(x_ref, w1_ref, t1_ref, w2_ref, t2_ref, o_ref):
    """One (B_blk, C, TN) tile: y = relu(W2 @ relu(W1 @ x + t1) + t2 + x)."""
    w1 = w1_ref[...]                       # (Cmid, C)  bf16, VMEM-resident
    w2 = w2_ref[...]                       # (C, Cmid)  bf16
    t1 = t1_ref[...]                       # (Cmid, 1)  f32
    t2 = t2_ref[...]                       # (C, 1)     f32
    for b in range(x_ref.shape[0]):        # static unroll over the batch block
        x = x_ref[b]                       # (C, TN) — channels on sublanes, points on lanes
        h = jnp.dot(w1, x.astype(jnp.bfloat16),
                    preferred_element_type=jnp.float32)          # (Cmid, TN)
        h = jnp.maximum(h + t1, 0.0)
        z = jnp.dot(w2, h.astype(jnp.bfloat16),
                    preferred_element_type=jnp.float32)          # (C, TN)
        o_ref[b] = jnp.maximum(z + t2 + x.astype(jnp.float32),
                               0.0).astype(o_ref.dtype)


def _choose_tiling(B, C, Cmid, n_pad, x_item, out_item,
                   x_tile_budget=2 << 20, vmem_budget=20 << 20):
    """Pick (batch block, point tile) under an explicit VMEM budget."""
    tn_cands = [t for t in range(_LANE, n_pad + 1, _LANE) if n_pad % t == 0]

    def est_bytes(b_blk, tn):
        tiles = 2 * b_blk * C * tn * (x_item + out_item)          # double-buffered I/O
        params = 2 * (Cmid * C + C * Cmid) + 4 * (Cmid + C)       # single-buffered
        scratch = b_blk * tn * (4 * Cmid + 2 * Cmid + 2 * C + 4 * C)  # h, casts, z
        return tiles + params + scratch

    # Largest TN whose per-batch x tile is ~<=2 MiB and whose footprint fits VMEM.
    tn = tn_cands[0]
    for t in tn_cands:
        if C * t * x_item <= x_tile_budget and est_bytes(1, t) <= vmem_budget:
            tn = t
    # Largest batch block (divisor of B) still inside the VMEM budget.
    b_blk = 1
    for b in range(B, 0, -1):
        if B % b == 0 and est_bytes(b, tn) <= vmem_budget:
            b_blk = b
            break
    # v7x megacore: avoid a single-step grid so both TensorCores get work.
    if (B // b_blk) * (n_pad // tn) == 1:
        if B > 1:
            b_blk = max(b for b in range(1, B // 2 + 1) if B % b == 0)
        elif tn % (2 * _LANE) == 0:
            tn //= 2
    return b_blk, tn, est_bytes(b_blk, tn)


def conv_bn_relu_res1d(x_ncl, folded_params, out_dtype=None,
                       single_buffer_params=True):
    """x_ncl: (B, C, N) float32 or bfloat16 (PyTorch NCL layout) -> (B, C, N)."""
    w1, t1, w2, t2 = folded_params          # w1:(Cmid,C) bf16, t1:(Cmid,1) f32, ...
    B, C, N = x_ncl.shape
    Cmid = w1.shape[0]
    out_dtype = x_ncl.dtype if out_dtype is None else out_dtype

    # Lane-dense stores: pad the point axis up to a multiple of 128.
    n_pad = ((N + _LANE - 1) // _LANE) * _LANE
    x_in = x_ncl if n_pad == N else jnp.pad(
        x_ncl, ((0, 0), (0, 0), (0, n_pad - N)))

    x_item = jnp.dtype(x_ncl.dtype).itemsize
    out_item = jnp.dtype(out_dtype).itemsize
    b_blk, tn, vmem_est = _choose_tiling(B, C, Cmid, n_pad, x_item, out_item)
    grid = (B // b_blk, n_pad // tn)

    # Explicit scoped-VMEM limit derived from the same budget (v5e default is
    # only 16 MiB scoped; cap at 48 MiB to stay safely inside v7x's 64 MiB).
    vmem_limit = int(min(48 << 20, max(32 << 20, 2 * vmem_est)))

    flops = 2 * B * n_pad * (C * Cmid + Cmid * C)
    bytes_accessed = (x_in.size * x_item + B * C * n_pad * out_item
                      + 2 * (w1.size + w2.size) + 4 * (t1.size + t2.size))

    # Constant-index params: single-buffer to reclaim VMEM (fallback if the
    # installed jax lacks pipeline_mode support).
    param_mode = None
    if single_buffer_params and hasattr(pl, "Buffered"):
        param_mode = pl.Buffered(1)

    def param_spec(shape):
        if param_mode is None:
            return pl.BlockSpec(shape, lambda b, n: (0, 0))
        return pl.BlockSpec(shape, lambda b, n: (0, 0), pipeline_mode=param_mode)

    call = pl.pallas_call(
        _block_kernel,
        out_shape=jax.ShapeDtypeStruct((B, C, n_pad), out_dtype),
        grid_spec=pltpu.PrefetchScalarGridSpec(
            num_scalar_prefetch=0,
            grid=grid,
            in_specs=[
                pl.BlockSpec((b_blk, C, tn), lambda b, n: (b, 0, n)),   # x tile
                param_spec((Cmid, C)),                                  # folded W1 (bf16)
                param_spec((Cmid, 1)),                                  # folded shift 1
                param_spec((C, Cmid)),                                  # folded W2 (bf16)
                param_spec((C, 1)),                                     # folded shift 2
            ],
            out_specs=pl.BlockSpec((b_blk, C, tn), lambda b, n: (b, 0, n)),
        ),
        compiler_params=pltpu.CompilerParams(
            dimension_semantics=("parallel", "parallel"),
            vmem_limit_bytes=vmem_limit),
        cost_estimate=pl.CostEstimate(
            flops=flops, transcendentals=0, bytes_accessed=bytes_accessed),
    )

    try:
        out = call(x_in, w1, t1, w2, t2)
    except Exception:
        if not single_buffer_params:
            raise
        return conv_bn_relu_res1d(x_ncl, folded_params, out_dtype=out_dtype,
                                  single_buffer_params=False)

    return out if n_pad == N else out[:, :, :N]


def init_params(key, channel, res_expansion=1.0):
    """Deterministic synthetic parameters with the PyTorch module's shapes."""
    cmid = int(channel * res_expansion)
    ks = jax.random.split(key, 12)
    # Conv1d weights (out, in, 1) squeezed -> (out, in); biases (out,)
    w1 = 0.1 * jax.random.normal(ks[0], (cmid, channel), jnp.float32)
    b1 = 0.1 * jax.random.normal(ks[1], (cmid,), jnp.float32)
    g1 = 1.0 + 0.1 * jax.random.normal(ks[2], (cmid,), jnp.float32)
    be1 = 0.1 * jax.random.normal(ks[3], (cmid,), jnp.float32)
    m1 = 0.1 * jax.random.normal(ks[4], (cmid,), jnp.float32)
    v1 = jnp.abs(1.0 + 0.1 * jax.random.normal(ks[5], (cmid,), jnp.float32))

    w2 = 0.1 * jax.random.normal(ks[6], (channel, cmid), jnp.float32)
    b2 = 0.1 * jax.random.normal(ks[7], (channel,), jnp.float32)
    g2 = 1.0 + 0.1 * jax.random.normal(ks[8], (channel,), jnp.float32)
    be2 = 0.1 * jax.random.normal(ks[9], (channel,), jnp.float32)
    m2 = 0.1 * jax.random.normal(ks[10], (channel,), jnp.float32)
    v2 = jnp.abs(1.0 + 0.1 * jax.random.normal(ks[11], (channel,), jnp.float32))
    return (w1, b1, g1, be1, m1, v1, w2, b2, g2, be2, m2, v2)


def fold_params(raw, eps=1e-5):
    """Fold eval-mode BN + conv bias into the weights / a single shift."""
    (w1, b1, g1, be1, m1, v1, w2, b2, g2, be2, m2, v2) = raw
    s1 = g1 / jnp.sqrt(v1 + eps)
    t1 = be1 - m1 * s1
    s2 = g2 / jnp.sqrt(v2 + eps)
    t2 = be2 - m2 * s2
    w1f = (s1[:, None] * w1).astype(jnp.bfloat16)          # (Cmid, C)
    t1f = (s1 * b1 + t1)[:, None].astype(jnp.float32)      # (Cmid, 1)
    w2f = (s2[:, None] * w2).astype(jnp.bfloat16)          # (C, Cmid)
    t2f = (s2 * b2 + t2)[:, None].astype(jnp.float32)      # (C, 1)
    return (w1f, t1f, w2f, t2f)


def reference(x_ncl, folded_params):
    """Pure-JAX reference of the same (folded, bf16-matmul) math, f32 output."""
    w1, t1, w2, t2 = folded_params
    x_f32 = x_ncl.astype(jnp.float32)
    h = jnp.einsum('mc,bcn->bmn', w1, x_ncl.astype(jnp.bfloat16),
                   preferred_element_type=jnp.float32)
    h = jnp.maximum(h + t1[None], 0.0)
    z = jnp.einsum('cm,bmn->bcn', w2, h.astype(jnp.bfloat16),
                   preferred_element_type=jnp.float32)
    return jnp.maximum(z + t2[None] + x_f32, 0.0)


if __name__ == "__main__":
    B, C, N = 2, 16, 1024          # small PointMLP-like shapes (NCL layout)
    key = jax.random.PRNGKey(0)
    kx, kp = jax.random.split(key)

    x = jax.random.normal(kx, (B, C, N), jnp.float32)       # PyTorch NCL input
    raw_params = init_params(kp, C, res_expansion=1.0)
    folded = fold_params(raw_params)

    # f32 activation path (matches the PyTorch module's dtype).
    out = jax.block_until_ready(conv_bn_relu_res1d(x, folded))
    ref = reference(x, folded)
    assert out.shape == (B, C, N)
    assert jnp.allclose(out, ref, atol=2e-3, rtol=2e-3), float(
        jnp.max(jnp.abs(out - ref)))

    # bf16 activation I/O path (halves HBM traffic; MXU math is already bf16).
    x_bf = x.astype(jnp.bfloat16)
    out_bf = jax.block_until_ready(conv_bn_relu_res1d(x_bf, folded))
    ref_bf = reference(x_bf, folded)
    assert out_bf.dtype == jnp.bfloat16
    assert jnp.allclose(out_bf.astype(jnp.float32), ref_bf, atol=5e-2, rtol=5e-2)

    # Ragged N (not a multiple of 128) exercises the pad-and-slice path.
    x_r = x[:, :, :1000]
    out_r = jax.block_until_ready(conv_bn_relu_res1d(x_r, folded))
    ref_r = reference(x_r, folded)
    assert out_r.shape == (B, C, 1000)
    assert jnp.allclose(out_r, ref_r, atol=2e-3, rtol=2e-3)

    print("KERNEL_OK")
</pallas_src>

<mosaic_0001>
module attributes {stable_mosaic.version = 11 : i64} {
  func.func @_block_kernel(%arg0: i32, %arg1: i32, %arg2: memref<1x16x1024xf32, #tpu.memory_space<vmem>>, %arg3: memref<16x16xbf16, #tpu.memory_space<vmem>>, %arg4: memref<16x1xf32, #tpu.memory_space<vmem>>, %arg5: memref<16x16xbf16, #tpu.memory_space<vmem>>, %arg6: memref<16x1xf32, #tpu.memory_space<vmem>>, %arg7: memref<1x16x1024xf32, #tpu.memory_space<vmem>>) attributes {dimension_semantics = [#tpu.dimension_semantics<parallel>, #tpu.dimension_semantics<parallel>], iteration_bounds = array<i64: 2, 1>, scalar_prefetch = 0 : i64, scratch_operands = 0 : i64, tpu.core_type = #tpu.core_type<tc>, window_params = [{transform_indices = @transform_0, window_bounds = array<i64: 1, 16, 1024>}, {pipeline_mode = #tpu.pipeline_mode<synchronous>, transform_indices = @transform_1, window_bounds = array<i64: 16, 16>}, {pipeline_mode = #tpu.pipeline_mode<synchronous>, transform_indices = @transform_2, window_bounds = array<i64: 16, 1>}, {pipeline_mode = #tpu.pipeline_mode<synchronous>, transform_indices = @transform_3, window_bounds = array<i64: 16, 16>}, {pipeline_mode = #tpu.pipeline_mode<synchronous>, transform_indices = @transform_4, window_bounds = array<i64: 16, 1>}, {transform_indices = @transform_5, window_bounds = array<i64: 1, 16, 1024>}]} {
    %c0 = arith.constant 0 : index
    %c0_0 = arith.constant 0 : index
    %0 = vector.load %arg3[%c0, %c0_0] : memref<16x16xbf16, #tpu.memory_space<vmem>>, vector<16x16xbf16>
    %c0_1 = arith.constant 0 : index
    %c0_2 = arith.constant 0 : index
    %1 = vector.load %arg5[%c0_1, %c0_2] : memref<16x16xbf16, #tpu.memory_space<vmem>>, vector<16x16xbf16>
    %c0_3 = arith.constant 0 : index
    %c0_4 = arith.constant 0 : index
    %2 = vector.load %arg4[%c0_3, %c0_4] : memref<16x1xf32, #tpu.memory_space<vmem>>, vector<16x1xf32>
    %c0_5 = arith.constant 0 : index
    %c0_6 = arith.constant 0 : index
    %3 = vector.load %arg6[%c0_5, %c0_6] : memref<16x1xf32, #tpu.memory_space<vmem>>, vector<16x1xf32>
    %c0_7 = arith.constant 0 : index
    %c0_8 = arith.constant 0 : index
    %c0_9 = arith.constant 0 : index
    %4 = vector.load %arg2[%c0_7, %c0_8, %c0_9] : memref<1x16x1024xf32, #tpu.memory_space<vmem>>, vector<1x16x1024xf32>
    %5 = vector.shape_cast %4 : vector<1x16x1024xf32> to vector<16x1024xf32>
    %6 = arith.truncf %5 : vector<16x1024xf32> to vector<16x1024xbf16>
    %cst = arith.constant dense<0.000000e+00> : vector<16x1024xf32>
    %7 = tpu.matmul %0, %6, %cst {dimension_numbers = #tpu.dot_dimension_numbers<[1], [0], [0], [1], [0, 0, 1, 1], [], []>} : vector<16x16xbf16>, vector<16x1024xbf16>, vector<16x1024xf32> -> vector<16x1024xf32>
    %8 = vector.broadcast %2 : vector<16x1xf32> to vector<16x1024xf32>
    %9 = arith.addf %7, %8 : vector<16x1024xf32>
    %cst_10 = arith.constant 0.000000e+00 : f32
    %10 = vector.broadcast %cst_10 : f32 to vector<16x1024xf32>
    %11 = arith.maximumf %9, %10 : vector<16x1024xf32>
    %12 = arith.truncf %11 : vector<16x1024xf32> to vector<16x1024xbf16>
    %cst_11 = arith.constant dense<0.000000e+00> : vector<16x1024xf32>
    %13 = tpu.matmul %1, %12, %cst_11 {dimension_numbers = #tpu.dot_dimension_numbers<[1], [0], [0], [1], [0, 0, 1, 1], [], []>} : vector<16x16xbf16>, vector<16x1024xbf16>, vector<16x1024xf32> -> vector<16x1024xf32>
    %14 = vector.broadcast %3 : vector<16x1xf32> to vector<16x1024xf32>
    %15 = arith.addf %13, %14 : vector<16x1024xf32>
    %16 = arith.addf %15, %5 : vector<16x1024xf32>
    %cst_12 = arith.constant 0.000000e+00 : f32
    %17 = vector.broadcast %cst_12 : f32 to vector<16x1024xf32>
    %18 = arith.maximumf %16, %17 : vector<16x1024xf32>
    %c0_13 = arith.constant 0 : index
    %c0_14 = arith.constant 0 : index
    %c0_15 = arith.constant 0 : index
    %19 = vector.load %arg7[%c0_13, %c0_14, %c0_15] : memref<1x16x1024xf32, #tpu.memory_space<vmem>>, vector<1x16x1024xf32>
    %20 = vector.shape_cast %19 : vector<1x16x1024xf32> to vector<16x1024xf32>
    %21 = vector.shape_cast %18 : vector<16x1024xf32> to vector<1x16x1024xf32>
    tpu.vector_store %arg7[%c0_13, %c0_14, %c0_15], %21 {strides = array<i32>} : memref<1x16x1024xf32, #tpu.memory_space<vmem>>, vector<1x16x1024xf32>,
    return
  }
  func.func @transform_0(%arg0: i32, %arg1: i32) -> (i32, i32, i32) {
    %c0_i32 = arith.constant 0 : i32
    %c0_i32_0 = arith.constant 0 : i32
    return %arg0, %c0_i32, %arg1 : i32, i32, i32
  }
  func.func @transform_1(%arg0: i32, %arg1: i32) -> (i32, i32) {
    %c0_i32 = arith.constant 0 : i32
    %c0_i32_0 = arith.constant 0 : i32
    %c0_i32_1 = arith.constant 0 : i32
    return %c0_i32, %c0_i32_0 : i32, i32
  }
  func.func @transform_2(%arg0: i32, %arg1: i32) -> (i32, i32) {
    %c0_i32 = arith.constant 0 : i32
    %c0_i32_0 = arith.constant 0 : i32
    %c0_i32_1 = arith.constant 0 : i32
    return %c0_i32, %c0_i32_0 : i32, i32
  }
  func.func @transform_3(%arg0: i32, %arg1: i32) -> (i32, i32) {
    %c0_i32 = arith.constant 0 : i32
    %c0_i32_0 = arith.constant 0 : i32
    %c0_i32_1 = arith.constant 0 : i32
    return %c0_i32, %c0_i32_0 : i32, i32
  }
  func.func @transform_4(%arg0: i32, %arg1: i32) -> (i32, i32) {
    %c0_i32 = arith.constant 0 : i32
    %c0_i32_0 = arith.constant 0 : i32
    %c0_i32_1 = arith.constant 0 : i32
    return %c0_i32, %c0_i32_0 : i32, i32
  }
  func.func @transform_5(%arg0: i32, %arg1: i32) -> (i32, i32, i32) {
    %c0_i32 = arith.constant 0 : i32
    %c0_i32_0 = arith.constant 0 : i32
    return %arg0, %c0_i32, %arg1 : i32, i32, i32
  }
}

module attributes {stable_mosaic.version = 11 : i64} {
  func.func @_block_kernel(%arg0: i32, %arg1: i32, %arg2: memref<1x16x1024xf32, #tpu.memory_space<vmem>>, %arg3: memref<16x16xbf16, #tpu.memory_space<vmem>>, %arg4: memref<16x1xf32, #tpu.memory_space<vmem>>, %arg5: memref<16x16xbf16, #tpu.memory_space<vmem>>, %arg6: memref<16x1xf32, #tpu.memory_space<vmem>>, %arg7: memref<1x16x1024xf32, #tpu.memory_space<vmem>>) attributes {dimension_semantics = [#tpu.dimension_semantics<parallel>, #tpu.dimension_semantics<parallel>], iteration_bounds = array<i64: 2, 1>, scalar_prefetch = 0 : i64, scratch_operands = 0 : i64, tpu.core_type = #tpu.core_type<tc>, window_params = [{transform_indices = @transform_0, window_bounds = array<i64: 1, 16, 1024>}, {pipeline_mode = #tpu.pipeline_mode<synchronous>, transform_indices = @transform_1, window_bounds = array<i64: 16, 16>}, {pipeline_mode = #tpu.pipeline_mode<synchronous>, transform_indices = @transform_2, window_bounds = array<i64: 16, 1>}, {pipeline_mode = #tpu.pipeline_mode<synchronous>, transform_indices = @transform_3, window_bounds = array<i64: 16, 16>}, {pipeline_mode = #tpu.pipeline_mode<synchronous>, transform_indices = @transform_4, window_bounds = array<i64: 16, 1>}, {transform_indices = @transform_5, window_bounds = array<i64: 1, 16, 1024>}]} {
    %c0 = arith.constant 0 : index
    %c0_0 = arith.constant 0 : index
    %0 = vector.load %arg3[%c0, %c0_0] : memref<16x16xbf16, #tpu.memory_space<vmem>>, vector<16x16xbf16>
    %c0_1 = arith.constant 0 : index
    %c0_2 = arith.constant 0 : index
    %1 = vector.load %arg5[%c0_1, %c0_2] : memref<16x16xbf16, #tpu.memory_space<vmem>>, vector<16x16xbf16>
    %c0_3 = arith.constant 0 : index
    %c0_4 = arith.constant 0 : index
    %2 = vector.load %arg4[%c0_3, %c0_4] : memref<16x1xf32, #tpu.memory_space<vmem>>, vector<16x1xf32>
    %c0_5 = arith.constant 0 : index
    %c0_6 = arith.constant 0 : index
    %3 = vector.load %arg6[%c0_5, %c0_6] : memref<16x1xf32, #tpu.memory_space<vmem>>, vector<16x1xf32>
    %c0_7 = arith.constant 0 : index
    %c0_8 = arith.constant 0 : index
    %c0_9 = arith.constant 0 : index
    %4 = vector.load %arg2[%c0_7, %c0_8, %c0_9] : memref<1x16x1024xf32, #tpu.memory_space<vmem>>, vector<1x16x1024xf32>
    %5 = vector.shape_cast %4 : vector<1x16x1024xf32> to vector<16x1024xf32>
    %6 = arith.truncf %5 : vector<16x1024xf32> to vector<16x1024xbf16>
    %cst = arith.constant dense<0.000000e+00> : vector<16x1024xf32>
    %7 = tpu.matmul %0, %6, %cst {dimension_numbers = #tpu.dot_dimension_numbers<[1], [0], [0], [1], [0, 0, 1, 1], [], []>} : vector<16x16xbf16>, vector<16x1024xbf16>, vector<16x1024xf32> -> vector<16x1024xf32>
    %8 = vector.broadcast %2 : vector<16x1xf32> to vector<16x1024xf32>
    %9 = arith.addf %7, %8 : vector<16x1024xf32>
    %cst_10 = arith.constant 0.000000e+00 : f32
    %10 = vector.broadcast %cst_10 : f32 to vector<16x1024xf32>
    %11 = arith.maximumf %9, %10 : vector<16x1024xf32>
    %12 = arith.truncf %11 : vector<16x1024xf32> to vector<16x1024xbf16>
    %cst_11 = arith.constant dense<0.000000e+00> : vector<16x1024xf32>
    %13 = tpu.matmul %1, %12, %cst_11 {dimension_numbers = #tpu.dot_dimension_numbers<[1], [0], [0], [1], [0, 0, 1, 1], [], []>} : vector<16x16xbf16>, vector<16x1024xbf16>, vector<16x1024xf32> -> vector<16x1024xf32>
    %14 = vector.broadcast %3 : vector<16x1xf32> to vector<16x1024xf32>
    %15 = arith.addf %13, %14 : vector<16x1024xf32>
    %16 = arith.addf %15, %5 : vector<16x1024xf32>
    %cst_12 = arith.constant 0.000000e+00 : f32
    %17 = vector.broadcast %cst_12 : f32 to vector<16x1024xf32>
    %18 = arith.maximumf %16, %17 : vector<16x1024xf32>
    %c0_13 = arith.constant 0 : index
    %c0_14 = arith.constant 0 : index
    %c0_15 = arith.constant 0 : index
    %19 = vector.load %arg7[%c0_13, %c0_14, %c0_15] : memref<1x16x1024xf32, #tpu.memory_space<vmem>>, vector<1x16x1024xf32>
    %20 = vector.shape_cast %19 : vector<1x16x1024xf32> to vector<16x1024xf32>
    %21 = vector.shape_cast %18 : vector<16x1024xf32> to vector<1x16x1024xf32>
    tpu.vector_store %arg7[%c0_13, %c0_14, %c0_15], %21 {strides = array<i32>} : memref<1x16x1024xf32, #tpu.memory_space<vmem>>, vector<1x16x1024xf32>,
    return
  }
  func.func @transform_0(%arg0: i32, %arg1: i32) -> (i32, i32, i32) {
    %c0_i32 = arith.constant 0 : i32
    %c0_i32_0 = arith.constant 0 : i32
    return %arg0, %c0_i32, %arg1 : i32, i32, i32
  }
  func.func @transform_1(%arg0: i32, %arg1: i32) -> (i32, i32) {
    %c0_i32 = arith.constant 0 : i32
    %c0_i32_0 = arith.constant 0 : i32
    %c0_i32_1 = arith.constant 0 : i32
    return %c0_i32, %c0_i32_0 : i32, i32
  }
  func.func @transform_2(%arg0: i32, %arg1: i32) -> (i32, i32) {
    %c0_i32 = arith.constant 0 : i32
    %c0_i32_0 = arith.constant 0 : i32
    %c0_i32_1 = arith.constant 0 : i32
    return %c0_i32, %c0_i32_0 : i32, i32
  }
  func.func @transform_3(%arg0: i32, %arg1: i32) -> (i32, i32) {
    %c0_i32 = arith.constant 0 : i32
    %c0_i32_0 = arith.constant 0 : i32
    %c0_i32_1 = arith.constant 0 : i32
    return %c0_i32, %c0_i32_0 : i32, i32
  }
  func.func @transform_4(%arg0: i32, %arg1: i32) -> (i32, i32) {
    %c0_i32 = arith.constant 0 : i32
    %c0_i32_0 = arith.constant 0 : i32
    %c0_i32_1 = arith.constant 0 : i32
    return %c0_i32, %c0_i32_0 : i32, i32
  }
  func.func @transform_5(%arg0: i32, %arg1: i32) -> (i32, i32, i32) {
    %c0_i32 = arith.constant 0 : i32
    %c0_i32_0 = arith.constant 0 : i32
    return %arg0, %c0_i32, %arg1 : i32, i32, i32
  }
}

</mosaic_0001>

<llo_original>
// kernel: tpu_custom_call.1
$region0: #{tpu_custom_call.1}
  #allocation0 [shape = 'u32[]', space=smem, size = 0x4, offset = 0x4, fixed_abs, tag = 'smem constant byte address 0x4 - core index']
  #allocation1 [shape = 'u32[144,128]{1,0:T(1,128)}', space=vmem, size = 0x12000, scoped, tag = 'internal scratch']
  %s0 = inlined_call_operand.hbm [shape: f32[2,16,1024], index: 0, kind: input, shape index: {}]
  %s1 = inlined_call_operand.vmem [shape: bf16[16,16], index: 1, kind: input, shape index: {}]
  %s2 = inlined_call_operand.vmem [shape: f32[16,1], index: 2, kind: input, shape index: {}]
  %s3 = inlined_call_operand.vmem [shape: bf16[16,16], index: 3, kind: input, shape index: {}]
  %s4 = inlined_call_operand.vmem [shape: f32[16,1], index: 4, kind: input, shape index: {}]
  %s5 = inlined_call_operand.hbm [shape: f32[2,16,1024], index: 5, kind: output, shape index: {}]
  %s6 = sld [smem:[#allocation0]]
  $region57: #{tpu_custom_call.1} parent=0
    _
  %s8 = ssub.s32 1, %s6
  %s9 = scalar_select 0, %s8, %s6
  $region1: #{tpu_custom_call.1} parent=0
    #allocation2 [shape = 'u8[131072]{0}', space=vmem, size = 0x20000, scoped, tag = 'input window, operand 0']
    #allocation3 [shape = 's32[2]{0}', space=sflag, size = 0x8, scoped, tag = 'scoped memory for tpu_custom_call.1']
    #allocation4 [shape = 's32[2]{0}', space=sflag, size = 0x8, scoped, tag = 'scoped memory for tpu_custom_call.1']
    #allocation5 [shape = 'u8[131072]{0}', space=vmem, size = 0x20000, scoped, tag = 'output window, operand 0']
    %10 = vsyncpa [#allocation3], 0
    %s11 = scalar_lea.sflag [#allocation3], 1
    %12 = vsyncpa %s11, 0
    %13 = vsyncpa [#allocation4], 0
    %s14 = scalar_lea.sflag [#allocation4], 1
    %15 = vsyncpa %s14, 0
    loop: start=0, step=1, limit=4
    $region2: #{tpu_custom_call.1} parent=1 // loop_pre_header
      _
    $region3: #{tpu_custom_call.1} parent=1 // loop_header
      %s17 = sphi 0, %s21
      %p18 = scmp.ge.s32.totalorder %s17, 4
      %s24 = sphi 0, %s36
      %s25 = sphi 0, %s32
      %s26 = sphi 0, %s24
      %s27 = sphi 0, %s25
      %s28 = sphi 0, %s26
      %s29 = sphi 0, %s27
      %s41 = sphi 0, %s43
      %s44 = sphi 0, %s41
      %s45 = sphi 0, %s44
      %s61 = sphi 0, %s45
      %s65 = sphi 0, %s65
      %s67 = sphi 0, %s65
      %s68 = sphi 0, %s67
      %s82 = sphi 0, %s68
      %s86 = sphi 0, %s86
      %s88 = sphi 0, %s86
      %s89 = sphi 0, %s88
      %s103 = sphi 0, %s89
      %s107 = sphi 0, %s107
      %s109 = sphi 0, %s107
      %s110 = sphi 0, %s109
      %s124 = sphi 0, %s110
      %s128 = sphi 0, %s128
      %s130 = sphi 0, %s128
      %s131 = sphi 0, %s130
      %s145 = sphi 0, %s131
      %s153 = sphi 0, %s155
      %s156 = sphi 0, %s153
      %s157 = sphi 0, %s156
      %s173 = sphi 0, %s157
    $region4: #{tpu_custom_call.1} parent=1 // loop_header_branch
      %20 = sbr.rel (%p18) target = $region8
    $region5: #{tpu_custom_call.1} parent=1 // loop_body
      %s22 = ssub.s32 %s17, 1
      %s23 = ssub.s32 %s17, 2
      %s30 = sadd.s32 1, %s25
      %p31 = scmp.ge.s32.totalorder %s30, 1
      %s32 = scalar_select %p31, 0, %s30
      %s33 = sadd.s32 1, %s24
      %s34 = scalar_select %p31, %s33, %s24
      %p35 = scmp.ge.s32.totalorder %s34, 2
      %s36 = scalar_select %p35, 0, %s34
      %s37 = ssub.s32 %s24, %s36
      %s38 = ssub.s32 %s25, %s32
      %s39 = sor.u32 %s37, %s38
      %p40 = scmp.eq.s32.totalorder %s39, 0
      %s42 = sadd.s32 %s41, 1
      %s43 = scalar_select %p40, %s41, %s42
      %p46 = pneg %p40
      %p47 = scmp.eq.s32.totalorder %s17, 1
      %p48 = por %p46, %p47
      %p49 = scmp.ne.s32.totalorder %s41, %s44
      %p50 = scmp.eq.s32.totalorder %s17, 0
      %p51 = por %p49, %p50
      %p52 = scmp.ne.s32.totalorder %s41, %s44
      %p53 = scmp.eq.s32.totalorder %s22, 1
      %p54 = por %p52, %p53
      %p55 = scmp.ne.s32.totalorder %s44, %s45
      %p56 = scmp.eq.s32.totalorder %s22, 0
      %p57 = por %p55, %p56
      %p58 = scmp.ne.s32.totalorder %s44, %s45
      %p59 = scmp.eq.s32.totalorder %s23, 1
      %p60 = por %p58, %p59
      %p62 = scmp.ne.s32.totalorder %s45, %s61
      %p63 = scmp.eq.s32.totalorder %s23, 0
      %p64 = por %p62, %p63
      %s66 = sadd.s32 %s65, 1
      %p69 = scmp.eq.s32.totalorder %s17, 1
      %p70 = scmp.ne.s32.totalorder %s65, %s67
      %p71 = scmp.eq.s32.totalorder %s17, 0
      %p72 = por %p70, %p71
      %p73 = scmp.ne.s32.totalorder %s65, %s67
      %p74 = scmp.eq.s32.totalorder %s22, 1
      %p75 = por %p73, %p74
      %p76 = scmp.ne.s32.totalorder %s67, %s68
      %p77 = scmp.eq.s32.totalorder %s22, 0
      %p78 = por %p76, %p77
      %p79 = scmp.ne.s32.totalorder %s67, %s68
      %p80 = scmp.eq.s32.totalorder %s23, 1
      %p81 = por %p79, %p80
      %p83 = scmp.ne.s32.totalorder %s68, %s82
      %p84 = scmp.eq.s32.totalorder %s23, 0
      %p85 = por %p83, %p84
      %s87 = sadd.s32 %s86, 1
      %p90 = scmp.eq.s32.totalorder %s17, 1
      %p91 = scmp.ne.s32.totalorder %s86, %s88
      %p92 = scmp.eq.s32.totalorder %s17, 0
      %p93 = por %p91, %p92
      %p94 = scmp.ne.s32.totalorder %s86, %s88
      %p95 = scmp.eq.s32.totalorder %s22, 1
      %p96 = por %p94, %p95
      %p97 = scmp.ne.s32.totalorder %s88, %s89
      %p98 = scmp.eq.s32.totalorder %s22, 0
      %p99 = por %p97, %p98
      %p100 = scmp.ne.s32.totalorder %s88, %s89
      %p101 = scmp.eq.s32.totalorder %s23, 1
      %p102 = por %p100, %p101
      %p104 = scmp.ne.s32.totalorder %s89, %s103
      %p105 = scmp.eq.s32.totalorder %s23, 0
      %p106 = por %p104, %p105
      %s108 = sadd.s32 %s107, 1
      %p111 = scmp.eq.s32.totalorder %s17, 1
      %p112 = scmp.ne.s32.totalorder %s107, %s109
      %p113 = scmp.eq.s32.totalorder %s17, 0
      %p114 = por %p112, %p113
      %p115 = scmp.ne.s32.totalorder %s107, %s109
      %p116 = scmp.eq.s32.totalorder %s22, 1
      %p117 = por %p115, %p116
      %p118 = scmp.ne.s32.totalorder %s109, %s110
      %p119 = scmp.eq.s32.totalorder %s22, 0
      %p120 = por %p118, %p119
      %p121 = scmp.ne.s32.totalorder %s109, %s110
      %p122 = scmp.eq.s32.totalorder %s23, 1
      %p123 = por %p121, %p122
      %p125 = scmp.ne.s32.totalorder %s110, %s124
      %p126 = scmp.eq.s32.totalorder %s23, 0
      %p127 = por %p125, %p126
      %s129 = sadd.s32 %s128, 1
      %p132 = scmp.eq.s32.totalorder %s17, 1
      %p133 = scmp.ne.s32.totalorder %s128, %s130
      %p134 = scmp.eq.s32.totalorder %s17, 0
      %p135 = por %p133, %p134
      %p136 = scmp.ne.s32.totalorder %s128, %s130
      %p137 = scmp.eq.s32.totalorder %s22, 1
      %p138 = por %p136, %p137
      %p139 = scmp.ne.s32.totalorder %s130, %s131
      %p140 = scmp.eq.s32.totalorder %s22, 0
      %p141 = por %p139, %p140
      %p142 = scmp.ne.s32.totalorder %s130, %s131
      %p143 = scmp.eq.s32.totalorder %s23, 1
      %p144 = por %p142, %p143
      %p146 = scmp.ne.s32.totalorder %s131, %s145
      %p147 = scmp.eq.s32.totalorder %s23, 0
      %p148 = por %p146, %p147
      %s149 = ssub.s32 %s24, %s36
      %s150 = ssub.s32 %s25, %s32
      %s151 = sor.u32 %s149, %s150
      %p152 = scmp.eq.s32.totalorder %s151, 0
      %s154 = sadd.s32 %s153, 1
      %s155 = scalar_select %p152, %s153, %s154
      %p158 = pneg %p152
      %p159 = scmp.eq.s32.totalorder %s17, 1
      %p160 = por %p158, %p159
      %p161 = scmp.ne.s32.totalorder %s153, %s156
      %p162 = scmp.eq.s32.totalorder %s17, 0
      %p163 = por %p161, %p162
      %p164 = scmp.ne.s32.totalorder %s153, %s156
      %p165 = scmp.eq.s32.totalorder %s22, 1
      %p166 = por %p164, %p165
      %p167 = scmp.ne.s32.totalorder %s156, %s157
      %p168 = scmp.eq.s32.totalorder %s22, 0
      %p169 = por %p167, %p168
      %p170 = scmp.ne.s32.totalorder %s156, %s157
      %p171 = scmp.eq.s32.totalorder %s23, 1
      %p172 = por %p170, %p171
      %p174 = scmp.ne.s32.totalorder %s157, %s173
      %p175 = scmp.eq.s32.totalorder %s23, 0
      %p176 = por %p174, %p175
      %p177 = scmp.le.s32.totalorder 1, %s17
      %p178 = scmp.lt.s32.totalorder %s17, 3
      %p179 = pnand %p177, %p178
      %p180 = pneg %p179
      // Predicated region
      $region9: #{tpu_custom_call.1} parent=5 // pred_check
        _
      $region10: #{tpu_custom_call.1} parent=5 // pred_check_branch
        %182 = sbr.rel (%p179) target = $region12
      $region11: #{tpu_custom_call.1} parent=5 // pred_region
        %s183 = ssub.s32 %s17, 1
        // Predicated region
        $region13: #{tpu_custom_call.1} parent=11 // pred_check
          %p184 = pneg %p78
        $region14: #{tpu_custom_call.1} parent=11 // pred_check_branch
          %186 = sbr.rel (%p184) target = $region16
        $region15: #{tpu_custom_call.1} parent=11 // pred_region
          _
        $region16: #{tpu_custom_call.1} parent=11 // pred_fallthru
          _
        // Predicated region
        $region17: #{tpu_custom_call.1} parent=11 // pred_check
          %p187 = pneg %p99
        $region18: #{tpu_custom_call.1} parent=11 // pred_check_branch
          %189 = sbr.rel (%p187) target = $region20
        $region19: #{tpu_custom_call.1} parent=11 // pred_region
          _
        $region20: #{tpu_custom_call.1} parent=11 // pred_fallthru
          _
        // Predicated region
        $region21: #{tpu_custom_call.1} parent=11 // pred_check
          %p190 = pneg %p120
        $region22: #{tpu_custom_call.1} parent=11 // pred_check_branch
          %192 = sbr.rel (%p190) target = $region24
        $region23: #{tpu_custom_call.1} parent=11 // pred_region
          _
        $region24: #{tpu_custom_call.1} parent=11 // pred_fallthru
          _
        // Predicated region
        $region25: #{tpu_custom_call.1} parent=11 // pred_check
          %p193 = pneg %p141
        $region26: #{tpu_custom_call.1} parent=11 // pred_check_branch
          %195 = sbr.rel (%p193) target = $region28
        $region27: #{tpu_custom_call.1} parent=11 // pred_region
          _
        $region28: #{tpu_custom_call.1} parent=11 // pred_fallthru
          _
      $region12: #{tpu_custom_call.1} parent=5 // pred_fallthru
        _
      %p196 = scmp.lt.s32.totalorder %s17, 2
      // Predicated region
      $region29: #{tpu_custom_call.1} parent=5 // pred_check
        %p197 = pneg %p196
      $region30: #{tpu_custom_call.1} parent=5 // pred_check_branch
        %199 = sbr.rel (%p197) target = $region32
      $region31: #{tpu_custom_call.1} parent=5 // pred_region
        // Predicated region
        $region33: #{tpu_custom_call.1} parent=31 // pred_check
          %p200 = pneg %p51
        $region34: #{tpu_custom_call.1} parent=31 // pred_check_branch
          %202 = sbr.rel (%p200) target = $region36
        $region35: #{tpu_custom_call.1} parent=31 // pred_region
          %s203 = sand.u32 %s41, 1
          %s204 = scalar_lea.sflag [#allocation3], %s203
          %s205 = sand.u32 %s41, 1
          %s206 = smul.addr %s205, 128
          %s207 = scalar_lea.vmem [#allocation2], %s206
          %s208 = smul.u32 8, %s25
          %s210 = ssub.s32 2048, 2048
          %211 = vsyncadd %s204, %s210
          %s212 = smul.addr %s24, 16
          %s213 = sadd.s32 %s208, %s212
          %s214 = smul.addr %s213, 128
          %s215 = scalar_lea.hbm %s0, %s214
          %s216 = sshll.u32 %s207, 4
          %s217 = int_to_ptr.vmem [resolvable:$true] %s216
          %222 = dma.hbm_to_vmem [thread:$0]  %s215, 2048, %s217, %s204, 1024, 1024, 64
        $region36: #{tpu_custom_call.1} parent=31 // pred_fallthru
          _
      $region32: #{tpu_custom_call.1} parent=5 // pred_fallthru
        _
      %p223 = scmp.le.s32.totalorder 1, %s17
      %p224 = scmp.lt.s32.totalorder %s17, 3
      %p225 = pnand %p223, %p224
      %p226 = pneg %p225
      // Predicated region
      $region37: #{tpu_custom_call.1} parent=5 // pred_check
        _
      $region38: #{tpu_custom_call.1} parent=5 // pred_check_branch
        %228 = sbr.rel (%p225) target = $region40
      $region39: #{tpu_custom_call.1} parent=5 // pred_region
        %s229 = ssub.s32 %s17, 1
        %s230 = sand.u32 %s44, 1
        %s231 = scalar_lea.sflag [#allocation3], %s230
        %s232 = sand.u32 %s44, 1
        %s233 = smul.addr %s232, 128
        %s234 = scalar_lea.vmem [#allocation2], %s233
        // Predicated region
        $region41: #{tpu_custom_call.1} parent=39 // pred_check
          %p235 = pneg %p57
        $region42: #{tpu_custom_call.1} parent=39 // pred_check_branch
          %237 = sbr.rel (%p235) target = $region44
        $region43: #{tpu_custom_call.1} parent=39 // pred_region
          %238 = dma.done %s231, 2048
        $region44: #{tpu_custom_call.1} parent=39 // pred_fallthru
          _
        %s239 = sand.u32 %s44, 1
        %s240 = scalar_lea.sflag [#allocation3], %s239
        %s241 = sand.u32 %s44, 1
        %s242 = smul.addr %s241, 128
        %s243 = scalar_lea.vmem [#allocation2], %s242
        %p244 = pneg %p57
        %p245 = pneg %p54
        %p246 = pneg %p78
        %p247 = pneg %p75
        %p248 = pneg %p99
        %p249 = pneg %p96
        %p250 = pneg %p120
        %p251 = pneg %p117
        %p252 = pneg %p141
        %p253 = pneg %p138
        %p254 = pneg %p169
        %p255 = pneg %p166
        %s256 = sand.u32 %s156, 1
        %s257 = scalar_lea.sflag [#allocation4], %s256
        %s258 = sand.u32 %s156, 1
        %s259 = smul.addr %s258, 128
        %s260 = scalar_lea.vmem [#allocation5], %s259
        %s261 = smul.u32 8, %s27
        %s262 = smul.u32 8, %s27
        %v264 = vld [vmem:[%s1] sm:$0xf]
        %v265 = vld [vmem:[%s1 + $0x4] sm:$0xf]
        %v266 = vld [vmem:[%s3] sm:$0xf]
        %v267 = vld [vmem:[%s3 + $0x4] sm:$0xf]
        %v268 = vld [vmem:[%s2] sm:$0xff]
        %v269 = vld [vmem:[%s2 + $0x8] sm:$0xff]
        %v270 = vld [vmem:[%s4] sm:$0xff]
        %v271 = vld [vmem:[%s4 + $0x8] sm:$0xff]
        %v272 = vld [vmem:[%s234] sm:$0xff]
        %v273 = vld [vmem:[%s234 + $0x8] sm:$0xff]
        %v274 = vld [vmem:[%s234 + $0x10] sm:$0xff]
        %v275 = vld [vmem:[%s234 + $0x18] sm:$0xff]
        %v276 = vld [vmem:[%s234 + $0x20] sm:$0xff]
        %v277 = vld [vmem:[%s234 + $0x28] sm:$0xff]
        %v278 = vld [vmem:[%s234 + $0x30] sm:$0xff]
        %v279 = vld [vmem:[%s234 + $0x38] sm:$0xff]
        %v280 = vld [vmem:[%s234 + $0x40] sm:$0xff]
        %v281 = vld [vmem:[%s234 + $0x48] sm:$0xff]
        %v282 = vld [vmem:[%s234 + $0x50] sm:$0xff]
        %v283 = vld [vmem:[%s234 + $0x58] sm:$0xff]
        %v284 = vld [vmem:[%s234 + $0x60] sm:$0xff]
        %v285 = vld [vmem:[%s234 + $0x68] sm:$0xff]
        %v286 = vld [vmem:[%s234 + $0x70] sm:$0xff]
        %v287 = vld [vmem:[%s234 + $0x78] sm:$0xff]
        %v288 = vpack.c.bf16 %v280, %v272
        %v289 = vpack.c.bf16 %v281, %v273
        %v290 = vpack.c.bf16 %v282, %v274
        %v291 = vpack.c.bf16 %v283, %v275
        %v292 = vpack.c.bf16 %v284, %v276
        %v293 = vpack.c.bf16 %v285, %v277
        %v294 = vpack.c.bf16 %v286, %v278
        %v295 = vpack.c.bf16 %v287, %v279
        %297 = vset.pattern.permute.xlu0 0
        %298 = vperm.xlu0 %297, %v268
        %v299 = vpop.permute.xlu0 %298
        %302 = vset.pattern.permute.xlu0 0
        %303 = vperm.xlu0 %302, %v269
        %v304 = vpop.permute.xlu0 %303
        %v308 = vunpack.c.l.b16 %v264
        %v309 = vunpack.c.l.b16 %v265
        %v310 = vpack.c.b16 %v309, %v308
        %vm311 = vcmask 130048
        %v313 = vsel %vm311, %v310, 0
        %315 = vmatprep.subr.bf16.mxu0 %v289
        %316 = vmatpush1.bf16.msra.mxu0 %v288
        %317 = vmatprep.subr.bf16.mxu0 0
        %318 = vmatpush1.bf16.msra.mxu0 0
        %319 = vmatprep.subr.bf16.mxu0 0
        %320 = vmatpush1.bf16.msra.mxu0 0
        %321 = vmatprep.subr.bf16.mxu0 0
        %322 = vmatpush1.bf16.msra.mxu0 0
        %323 = vmatprep.subr.bf16.mxu0 0
        %324 = vmatpush1.bf16.msra.mxu0 0
        %325 = vmatprep.subr.bf16.mxu0 0
        %326 = vmatpush1.bf16.msra.mxu0 0
        %327 = vmatprep.subr.bf16.mxu0 0
        %328 = vmatpush1.bf16.msra.mxu0 0
        %329 = vmatprep.subr.bf16.mxu0 0
        %330 = vmatpush1.bf16.msra.mxu0 0
        %331 = vmatprep.subr.bf16.mxu0 0
        %332 = vmatpush1.bf16.msra.mxu0 0
        %333 = vmatprep.subr.bf16.mxu0 0
        %334 = vmatpush1.bf16.msra.mxu0 0
        %335 = vmatprep.subr.bf16.mxu0 0
        %336 = vmatpush1.bf16.msra.mxu0 0
        %337 = vmatprep.subr.bf16.mxu0 0
        %338 = vmatpush1.bf16.msra.mxu0 0
        %339 = vmatprep.subr.bf16.mxu0 0
        %340 = vmatpush1.bf16.msra.mxu0 0
        %341 = vmatprep.subr.bf16.mxu0 0
        %342 = vmatpush1.bf16.msra.mxu0 0
        %343 = vmatprep.subr.bf16.mxu0 0
        %344 = vmatpush1.bf16.msra.mxu0 0
        %345 = vmatprep.subr.bf16.mxu0 0
        %346 = vmatpush1.bf16.msra.mxu0 0
        %347 = vmatprep.mubr.bf16.mxu0 0
        %348 = vmatmul.mubr.bf16.gmra.mrb[0].mxu0 %v313
        %v349 = vpop.f32.mrb[0].mxu0
        %v350 = vadd.f32 %v299, %v349
        %v351 = vpop.f32.mrb[0].mxu0
        %v352 = vadd.f32 %v299, %v351
        %v353 = vpop.f32.mrb[0].mxu0
        %v354 = vadd.f32 %v304, %v353
        %v355 = vpop.f32.mrb[0].mxu0
        %v356 = vadd.f32 %v304, %v355
        %357 = vdwg.mxu0
        %358 = vmatprep.subr.bf16.mxu0 %v291
        %359 = vmatpush1.bf16.msra.mxu0 %v290
        %360 = vmatprep.subr.bf16.mxu0 0
        %361 = vmatpush1.bf16.msra.mxu0 0
        %362 = vmatprep.subr.bf16.mxu0 0
        %363 = vmatpush1.bf16.msra.mxu0 0
        %364 = vmatprep.subr.bf16.mxu0 0
        %365 = vmatpush1.bf16.msra.mxu0 0
        %366 = vmatprep.subr.bf16.mxu0 0
        %367 = vmatpush1.bf16.msra.mxu0 0
        %368 = vmatprep.subr.bf16.mxu0 0
        %369 = vmatpush1.bf16.msra.mxu0 0
        %370 = vmatprep.subr.bf16.mxu0 0
        %371 = vmatpush1.bf16.msra.mxu0 0
        %372 = vmatprep.subr.bf16.mxu0 0
        %373 = vmatpush1.bf16.msra.mxu0 0
        %374 = vmatprep.subr.bf16.mxu0 0
        %375 = vmatpush1.bf16.msra.mxu0 0
        %376 = vmatprep.subr.bf16.mxu0 0
        %377 = vmatpush1.bf16.msra.mxu0 0
        %378 = vmatprep.subr.bf16.mxu0 0
        %379 = vmatpush1.bf16.msra.mxu0 0
        %380 = vmatprep.subr.bf16.mxu0 0
        %381 = vmatpush1.bf16.msra.mxu0 0
        %382 = vmatprep.subr.bf16.mxu0 0
        %383 = vmatpush1.bf16.msra.mxu0 0
        %384 = vmatprep.subr.bf16.mxu0 0
        %385 = vmatpush1.bf16.msra.mxu0 0
        %386 = vmatprep.subr.bf16.mxu0 0
        %387 = vmatpush1.bf16.msra.mxu0 0
        %388 = vmatprep.subr.bf16.mxu0 0
        %389 = vmatpush1.bf16.msra.mxu0 0
        %390 = vmatprep.mubr.bf16.mxu0 0
        %391 = vmatmul.mubr.bf16.gmra.mrb[0].mxu0 %v313
        %v392 = vpop.f32.mrb[0].mxu0
        %v393 = vadd.f32 %v299, %v392
        %v394 = vpop.f32.mrb[0].mxu0
        %v395 = vadd.f32 %v299, %v394
        %v396 = vpop.f32.mrb[0].mxu0
        %v397 = vadd.f32 %v304, %v396
        %v398 = vpop.f32.mrb[0].mxu0
        %v399 = vadd.f32 %v304, %v398
        %400 = vdwg.mxu0
        %401 = vmatprep.subr.bf16.mxu0 %v293
        %402 = vmatpush1.bf16.msra.mxu0 %v292
        %403 = vmatprep.subr.bf16.mxu0 0
        %404 = vmatpush1.bf16.msra.mxu0 0
        %405 = vmatprep.subr.bf16.mxu0 0
        %406 = vmatpush1.bf16.msra.mxu0 0
        %407 = vmatprep.subr.bf16.mxu0 0
        %408 = vmatpush1.bf16.msra.mxu0 0
        %409 = vmatprep.subr.bf16.mxu0 0
        %410 = vmatpush1.bf16.msra.mxu0 0
        %411 = vmatprep.subr.bf16.mxu0 0
        %412 = vmatpush1.bf16.msra.mxu0 0
        %413 = vmatprep.subr.bf16.mxu0 0
        %414 = vmatpush1.bf16.msra.mxu0 0
        %415 = vmatprep.subr.bf16.mxu0 0
        %416 = vmatpush1.bf16.msra.mxu0 0
        %417 = vmatprep.subr.bf16.mxu0 0
        %418 = vmatpush1.bf16.msra.mxu0 0
        %419 = vmatprep.subr.bf16.mxu0 0
        %420 = vmatpush1.bf16.msra.mxu0 0
        %421 = vmatprep.subr.bf16.mxu0 0
        %422 = vmatpush1.bf16.msra.mxu0 0
        %423 = vmatprep.subr.bf16.mxu0 0
        %424 = vmatpush1.bf16.msra.mxu0 0
        %425 = vmatprep.subr.bf16.mxu0 0
        %426 = vmatpush1.bf16.msra.mxu0 0
        %427 = vmatprep.subr.bf16.mxu0 0
        %428 = vmatpush1.bf16.msra.mxu0 0
        %429 = vmatprep.subr.bf16.mxu0 0
        %430 = vmatpush1.bf16.msra.mxu0 0
        %431 = vmatprep.subr.bf16.mxu0 0
        %432 = vmatpush1.bf16.msra.mxu0 0
        %433 = vmatprep.mubr.bf16.mxu0 0
        %434 = vmatmul.mubr.bf16.gmra.mrb[0].mxu0 %v313
        %v435 = vpop.f32.mrb[0].mxu0
        %v436 = vadd.f32 %v299, %v435
        %v437 = vpop.f32.mrb[0].mxu0
        %v438 = vadd.f32 %v299, %v437
        %v439 = vpop.f32.mrb[0].mxu0
        %v440 = vadd.f32 %v304, %v439
        %v441 = vpop.f32.mrb[0].mxu0
        %v442 = vadd.f32 %v304, %v441
        %443 = vdwg.mxu0
        %444 = vmatprep.subr.bf16.mxu0 %v295
        %445 = vmatpush1.bf16.msra.mxu0 %v294
        %446 = vmatprep.subr.bf16.mxu0 0
        %447 = vmatpush1.bf16.msra.mxu0 0
        %448 = vmatprep.subr.bf16.mxu0 0
        %449 = vmatpush1.bf16.msra.mxu0 0
        %450 = vmatprep.subr.bf16.mxu0 0
        %451 = vmatpush1.bf16.msra.mxu0 0
        %452 = vmatprep.subr.bf16.mxu0 0
        %453 = vmatpush1.bf16.msra.mxu0 0
        %454 = vmatprep.subr.bf16.mxu0 0
        %455 = vmatpush1.bf16.msra.mxu0 0
        %456 = vmatprep.subr.bf16.mxu0 0
        %457 = vmatpush1.bf16.msra.mxu0 0
        %458 = vmatprep.subr.bf16.mxu0 0
        %459 = vmatpush1.bf16.msra.mxu0 0
        %460 = vmatprep.subr.bf16.mxu0 0
        %461 = vmatpush1.bf16.msra.mxu0 0
        %462 = vmatprep.subr.bf16.mxu0 0
        %463 = vmatpush1.bf16.msra.mxu0 0
        %464 = vmatprep.subr.bf16.mxu0 0
        %465 = vmatpush1.bf16.msra.mxu0 0
        %466 = vmatprep.subr.bf16.mxu0 0
        %467 = vmatpush1.bf16.msra.mxu0 0
        %468 = vmatprep.subr.bf16.mxu0 0
        %469 = vmatpush1.bf16.msra.mxu0 0
        %470 = vmatprep.subr.bf16.mxu0 0
        %471 = vmatpush1.bf16.msra.mxu0 0
        %472 = vmatprep.subr.bf16.mxu0 0
        %473 = vmatpush1.bf16.msra.mxu0 0
        %474 = vmatprep.subr.bf16.mxu0 0
        %475 = vmatpush1.bf16.msra.mxu0 0
        %476 = vmatprep.mubr.bf16.mxu0 0
        %477 = vmatmul.mubr.bf16.gmra.mrb[0].mxu0 %v313
        %v478 = vpop.f32.mrb[0].mxu0
        %v479 = vadd.f32 %v299, %v478
        %v480 = vpop.f32.mrb[0].mxu0
        %v481 = vadd.f32 %v299, %v480
        %v482 = vpop.f32.mrb[0].mxu0
        %v483 = vadd.f32 %v304, %v482
        %v484 = vpop.f32.mrb[0].mxu0
        %v485 = vadd.f32 %v304, %v484
        %486 = vdwg.mxu0
        %v487 = vmax.f32 %v350, 0.0
        %v488 = vmax.f32 %v352, 0.0
        %v489 = vmax.f32 %v393, 0.0
        %v490 = vmax.f32 %v395, 0.0
        %v491 = vmax.f32 %v436, 0.0
        %v492 = vmax.f32 %v438, 0.0
        %v493 = vmax.f32 %v479, 0.0
        %v494 = vmax.f32 %v481, 0.0
        %v495 = vmax.f32 %v354, 0.0
        %v496 = vmax.f32 %v356, 0.0
        %v497 = vmax.f32 %v397, 0.0
        %v498 = vmax.f32 %v399, 0.0
        %v499 = vmax.f32 %v440, 0.0
        %v500 = vmax.f32 %v442, 0.0
        %v501 = vmax.f32 %v483, 0.0
        %v502 = vmax.f32 %v485, 0.0
        %v503 = vpack.c.bf16 %v495, %v487
        %v504 = vpack.c.bf16 %v496, %v488
        %v505 = vpack.c.bf16 %v497, %v489
        %v506 = vpack.c.bf16 %v498, %v490
        %v507 = vpack.c.bf16 %v499, %v491
        %v508 = vpack.c.bf16 %v500, %v492
        %v509 = vpack.c.bf16 %v501, %v493
        %v510 = vpack.c.bf16 %v502, %v494
        %512 = vset.pattern.permute.xlu0 0
        %513 = vperm.xlu0 %512, %v270
        %v514 = vpop.permute.xlu0 %513
        %517 = vset.pattern.permute.xlu0 0
        %518 = vperm.xlu0 %517, %v271
        %v519 = vpop.permute.xlu0 %518
        %v523 = vunpack.c.l.b16 %v266
        %v524 = vunpack.c.l.b16 %v267
        %v525 = vpack.c.b16 %v524, %v523
        %v527 = vsel %vm311, %v525, 0
        %529 = vmatprep.subr.bf16.mxu0 %v504
        %530 = vmatpush1.bf16.msra.mxu0 %v503
        %531 = vmatprep.subr.bf16.mxu0 0
        %532 = vmatpush1.bf16.msra.mxu0 0
        %533 = vmatprep.subr.bf16.mxu0 0
        %534 = vmatpush1.bf16.msra.mxu0 0
        %535 = vmatprep.subr.bf16.mxu0 0
        %536 = vmatpush1.bf16.msra.mxu0 0
        %537 = vmatprep.subr.bf16.mxu0 0
        %538 = vmatpush1.bf16.msra.mxu0 0
        %539 = vmatprep.subr.bf16.mxu0 0
        %540 = vmatpush1.bf16.msra.mxu0 0
        %541 = vmatprep.subr.bf16.mxu0 0
        %542 = vmatpush1.bf16.msra.mxu0 0
        %543 = vmatprep.subr.bf16.mxu0 0
        %544 = vmatpush1.bf16.msra.mxu0 0
        %545 = vmatprep.subr.bf16.mxu0 0
        %546 = vmatpush1.bf16.msra.mxu0 0
        %547 = vmatprep.subr.bf16.mxu0 0
        %548 = vmatpush1.bf16.msra.mxu0 0
        %549 = vmatprep.subr.bf16.mxu0 0
        %550 = vmatpush1.bf16.msra.mxu0 0
        %551 = vmatprep.subr.bf16.mxu0 0
        %552 = vmatpush1.bf16.msra.mxu0 0
        %553 = vmatprep.subr.bf16.mxu0 0
        %554 = vmatpush1.bf16.msra.mxu0 0
        %555 = vmatprep.subr.bf16.mxu0 0
        %556 = vmatpush1.bf16.msra.mxu0 0
        %557 = vmatprep.subr.bf16.mxu0 0
        %558 = vmatpush1.bf16.msra.mxu0 0
        %559 = vmatprep.subr.bf16.mxu0 0
        %560 = vmatpush1.bf16.msra.mxu0 0
        %561 = vmatprep.mubr.bf16.mxu0 0
        %562 = vmatmul.mubr.bf16.gmra.mrb[0].mxu0 %v527
        %v563 = vpop.f32.mrb[0].mxu0
        %v564 = vadd.f32 %v514, %v563
        %v565 = vpop.f32.mrb[0].mxu0
        %v566 = vadd.f32 %v514, %v565
        %v567 = vpop.f32.mrb[0].mxu0
        %v568 = vadd.f32 %v519, %v567
        %v569 = vpop.f32.mrb[0].mxu0
        %v570 = vadd.f32 %v519, %v569
        %571 = vdwg.mxu0
        %572 = vmatprep.subr.bf16.mxu0 %v506
        %573 = vmatpush1.bf16.msra.mxu0 %v505
        %574 = vmatprep.subr.bf16.mxu0 0
        %575 = vmatpush1.bf16.msra.mxu0 0
        %576 = vmatprep.subr.bf16.mxu0 0
        %577 = vmatpush1.bf16.msra.mxu0 0
        %578 = vmatprep.subr.bf16.mxu0 0
        %579 = vmatpush1.bf16.msra.mxu0 0
        %580 = vmatprep.subr.bf16.mxu0 0
        %581 = vmatpush1.bf16.msra.mxu0 0
        %582 = vmatprep.subr.bf16.mxu0 0
        %583 = vmatpush1.bf16.msra.mxu0 0
        %584 = vmatprep.subr.bf16.mxu0 0
        %585 = vmatpush1.bf16.msra.mxu0 0
        %586 = vmatprep.subr.bf16.mxu0 0
        %587 = vmatpush1.bf16.msra.mxu0 0
        %588 = vmatprep.subr.bf16.mxu0 0
        %589 = vmatpush1.bf16.msra.mxu0 0
        %590 = vmatprep.subr.bf16.mxu0 0
        %591 = vmatpush1.bf16.msra.mxu0 0
        %592 = vmatprep.subr.bf16.mxu0 0
        %593 = vmatpush1.bf16.msra.mxu0 0
        %594 = vmatprep.subr.bf16.mxu0 0
        %595 = vmatpush1.bf16.msra.mxu0 0
        %596 = vmatprep.subr.bf16.mxu0 0
        %597 = vmatpush1.bf16.msra.mxu0 0
        %598 = vmatprep.subr.bf16.mxu0 0
        %599 = vmatpush1.bf16.msra.mxu0 0
        %600 = vmatprep.subr.bf16.mxu0 0
        %601 = vmatpush1.bf16.msra.mxu0 0
        %602 = vmatprep.subr.bf16.mxu0 0
        %603 = vmatpush1.bf16.msra.mxu0 0
        %604 = vmatprep.mubr.bf16.mxu0 0
        %605 = vmatmul.mubr.bf16.gmra.mrb[0].mxu0 %v527
        %v606 = vpop.f32.mrb[0].mxu0
        %v607 = vadd.f32 %v514, %v606
        %v608 = vpop.f32.mrb[0].mxu0
        %v609 = vadd.f32 %v514, %v608
        %v610 = vpop.f32.mrb[0].mxu0
        %v611 = vadd.f32 %v519, %v610
        %v612 = vpop.f32.mrb[0].mxu0
        %v613 = vadd.f32 %v519, %v612
        %614 = vdwg.mxu0
        %615 = vmatprep.subr.bf16.mxu0 %v508
        %616 = vmatpush1.bf16.msra.mxu0 %v507
        %617 = vmatprep.subr.bf16.mxu0 0
        %618 = vmatpush1.bf16.msra.mxu0 0
        %619 = vmatprep.subr.bf16.mxu0 0
        %620 = vmatpush1.bf16.msra.mxu0 0
        %621 = vmatprep.subr.bf16.mxu0 0
        %622 = vmatpush1.bf16.msra.mxu0 0
        %623 = vmatprep.subr.bf16.mxu0 0
        %624 = vmatpush1.bf16.msra.mxu0 0
        %625 = vmatprep.subr.bf16.mxu0 0
        %626 = vmatpush1.bf16.msra.mxu0 0
        %627 = vmatprep.subr.bf16.mxu0 0
        %628 = vmatpush1.bf16.msra.mxu0 0
        %629 = vmatprep.subr.bf16.mxu0 0
        %630 = vmatpush1.bf16.msra.mxu0 0
        %631 = vmatprep.subr.bf16.mxu0 0
        %632 = vmatpush1.bf16.msra.mxu0 0
        %633 = vmatprep.subr.bf16.mxu0 0
        %634 = vmatpush1.bf16.msra.mxu0 0
        %635 = vmatprep.subr.bf16.mxu0 0
        %636 = vmatpush1.bf16.msra.mxu0 0
        %637 = vmatprep.subr.bf16.mxu0 0
        %638 = vmatpush1.bf16.msra.mxu0 0
        %639 = vmatprep.subr.bf16.mxu0 0
        %640 = vmatpush1.bf16.msra.mxu0 0
        %641 = vmatprep.subr.bf16.mxu0 0
        %642 = vmatpush1.bf16.msra.mxu0 0
        %643 = vmatprep.subr.bf16.mxu0 0
        %644 = vmatpush1.bf16.msra.mxu0 0
        %645 = vmatprep.subr.bf16.mxu0 0
        %646 = vmatpush1.bf16.msra.mxu0 0
        %647 = vmatprep.mubr.bf16.mxu0 0
        %648 = vmatmul.mubr.bf16.gmra.mrb[0].mxu0 %v527
        %v649 = vpop.f32.mrb[0].mxu0
        %v650 = vadd.f32 %v514, %v649
        %v651 = vpop.f32.mrb[0].mxu0
        %v652 = vadd.f32 %v514, %v651
        %v653 = vpop.f32.mrb[0].mxu0
        %v654 = vadd.f32 %v519, %v653
        %v655 = vpop.f32.mrb[0].mxu0
        %v656 = vadd.f32 %v519, %v655
        %657 = vdwg.mxu0
        %658 = vmatprep.subr.bf16.mxu0 %v510
        %659 = vmatpush1.bf16.msra.mxu0 %v509
        %660 = vmatprep.subr.bf16.mxu0 0
        %661 = vmatpush1.bf16.msra.mxu0 0
        %662 = vmatprep.subr.bf16.mxu0 0
        %663 = vmatpush1.bf16.msra.mxu0 0
        %664 = vmatprep.subr.bf16.mxu0 0
        %665 = vmatpush1.bf16.msra.mxu0 0
        %666 = vmatprep.subr.bf16.mxu0 0
        %667 = vmatpush1.bf16.msra.mxu0 0
        %668 = vmatprep.subr.bf16.mxu0 0
        %669 = vmatpush1.bf16.msra.mxu0 0
        %670 = vmatprep.subr.bf16.mxu0 0
        %671 = vmatpush1.bf16.msra.mxu0 0
        %672 = vmatprep.subr.bf16.mxu0 0
        %673 = vmatpush1.bf16.msra.mxu0 0
        %674 = vmatprep.subr.bf16.mxu0 0
        %675 = vmatpush1.bf16.msra.mxu0 0
        %676 = vmatprep.subr.bf16.mxu0 0
        %677 = vmatpush1.bf16.msra.mxu0 0
        %678 = vmatprep.subr.bf16.mxu0 0
        %679 = vmatpush1.bf16.msra.mxu0 0
        %680 = vmatprep.subr.bf16.mxu0 0
        %681 = vmatpush1.bf16.msra.mxu0 0
        %682 = vmatprep.subr.bf16.mxu0 0
        %683 = vmatpush1.bf16.msra.mxu0 0
        %684 = vmatprep.subr.bf16.mxu0 0
        %685 = vmatpush1.bf16.msra.mxu0 0
        %686 = vmatprep.subr.bf16.mxu0 0
        %687 = vmatpush1.bf16.msra.mxu0 0
        %688 = vmatprep.subr.bf16.mxu0 0
        %689 = vmatpush1.bf16.msra.mxu0 0
        %690 = vmatprep.mubr.bf16.mxu0 0
        %691 = vmatmul.mubr.bf16.gmra.mrb[0].mxu0 %v527
        %v692 = vpop.f32.mrb[0].mxu0
        %v693 = vadd.f32 %v514, %v692
        %v694 = vpop.f32.mrb[0].mxu0
        %v695 = vadd.f32 %v514, %v694
        %v696 = vpop.f32.mrb[0].mxu0
        %v697 = vadd.f32 %v519, %v696
        %v698 = vpop.f32.mrb[0].mxu0
        %v699 = vadd.f32 %v519, %v698
        %700 = vdwg.mxu0
        %v701 = vadd.f32 %v564, %v272
        %v702 = vadd.f32 %v566, %v273
        %v703 = vadd.f32 %v607, %v274
        %v704 = vadd.f32 %v609, %v275
        %v705 = vadd.f32 %v650, %v276
        %v706 = vadd.f32 %v652, %v277
        %v707 = vadd.f32 %v693, %v278
        %v708 = vadd.f32 %v695, %v279
        %v709 = vadd.f32 %v568, %v280
        %v710 = vadd.f32 %v570, %v281
        %v711 = vadd.f32 %v611, %v282
        %v712 = vadd.f32 %v613, %v283
        %v713 = vadd.f32 %v654, %v284
        %v714 = vadd.f32 %v656, %v285
        %v715 = vadd.f32 %v697, %v286
        %v716 = vadd.f32 %v699, %v287
        %v717 = vmax.f32 %v701, 0.0
        %v718 = vmax.f32 %v702, 0.0
        %v719 = vmax.f32 %v703, 0.0
        %v720 = vmax.f32 %v704, 0.0
        %v721 = vmax.f32 %v705, 0.0
        %v722 = vmax.f32 %v706, 0.0
        %v723 = vmax.f32 %v707, 0.0
        %v724 = vmax.f32 %v708, 0.0
        %v725 = vmax.f32 %v709, 0.0
        %v726 = vmax.f32 %v710, 0.0
        %v727 = vmax.f32 %v711, 0.0
        %v728 = vmax.f32 %v712, 0.0
        %v729 = vmax.f32 %v713, 0.0
        %v730 = vmax.f32 %v714, 0.0
        %v731 = vmax.f32 %v715, 0.0
        %v732 = vmax.f32 %v716, 0.0
        %733 = vst [vmem:[%s260] sm:$0xff] %v717
        %734 = vst [vmem:[%s260 + $0x8] sm:$0xff] %v718
        %735 = vst [vmem:[%s260 + $0x10] sm:$0xff] %v719
        %736 = vst [vmem:[%s260 + $0x18] sm:$0xff] %v720
        %737 = vst [vmem:[%s260 + $0x20] sm:$0xff] %v721
        %738 = vst [vmem:[%s260 + $0x28] sm:$0xff] %v722
        %739 = vst [vmem:[%s260 + $0x30] sm:$0xff] %v723
        %740 = vst [vmem:[%s260 + $0x38] sm:$0xff] %v724
        %741 = vst [vmem:[%s260 + $0x40] sm:$0xff] %v725
        %742 = vst [vmem:[%s260 + $0x48] sm:$0xff] %v726
        %743 = vst [vmem:[%s260 + $0x50] sm:$0xff] %v727
        %744 = vst [vmem:[%s260 + $0x58] sm:$0xff] %v728
        %745 = vst [vmem:[%s260 + $0x60] sm:$0xff] %v729
        %746 = vst [vmem:[%s260 + $0x68] sm:$0xff] %v730
        %747 = vst [vmem:[%s260 + $0x70] sm:$0xff] %v731
        %748 = vst [vmem:[%s260 + $0x78] sm:$0xff] %v732
        %s749 = sand.u32 %s156, 1
        %s750 = scalar_lea.sflag [#allocation4], %s749
        %s751 = sand.u32 %s156, 1
        %s752 = smul.addr %s751, 128
        %s753 = scalar_lea.vmem [#allocation5], %s752
        // Predicated region
        $region45: #{tpu_custom_call.1} parent=39 // pred_check
          %p754 = pneg %p166
        $region46: #{tpu_custom_call.1} parent=39 // pred_check_branch
          %756 = sbr.rel (%p754) target = $region48
        $region47: #{tpu_custom_call.1} parent=39 // pred_region
          %s757 = smul.u32 8, %s27
          %s759 = ssub.s32 2048, 2048
          %760 = vsyncadd %s750, %s759
          %s761 = smul.addr %s26, 16
          %s762 = sadd.s32 %s757, %s761
          %s763 = smul.addr %s762, 128
          %s764 = scalar_lea.hbm %s5, %s763
          %s765 = sshll.u32 %s753, 4
          %s766 = int_to_ptr.vmem [resolvable:$true] %s765
          %771 = dma.vmem_to_hbm [thread:$0]  %s766, 2048, %s764, %s750, 1024, 1024, 64
        $region48: #{tpu_custom_call.1} parent=39 // pred_fallthru
          _
      $region40: #{tpu_custom_call.1} parent=5 // pred_fallthru
        _
      %p772 = scmp.le.s32.totalorder 2, %s17
      // Predicated region
      $region49: #{tpu_custom_call.1} parent=5 // pred_check
        %p773 = pneg %p772
      $region50: #{tpu_custom_call.1} parent=5 // pred_check_branch
        %775 = sbr.rel (%p773) target = $region52
      $region51: #{tpu_custom_call.1} parent=5 // pred_region
        %s776 = ssub.s32 %s17, 2
        // Predicated region
        $region53: #{tpu_custom_call.1} parent=51 // pred_check
          %p777 = pneg %p172
        $region54: #{tpu_custom_call.1} parent=51 // pred_check_branch
          %779 = sbr.rel (%p777) target = $region56
        $region55: #{tpu_custom_call.1} parent=51 // pred_region
          %s780 = sand.u32 %s157, 1
          %s781 = scalar_lea.sflag [#allocation4], %s780
          %s782 = sand.u32 %s157, 1
          %s783 = smul.addr %s782, 128
          %s784 = scalar_lea.vmem [#allocation5], %s783
          %785 = dma.done %s781, 2048
        $region56: #{tpu_custom_call.1} parent=51 // pred_fallthru
          _
      $region52: #{tpu_custom_call.1} parent=5 // pred_fallthru
        _
    $region6: #{tpu_custom_call.1} parent=1 // loop_footer
      %s21 = sadd.s32 1, %s17
    $region7: #{tpu_custom_call.1} parent=1 // loop_footer_branch
      %16 = sbr.rel target = $region3
    $region8: #{tpu_custom_call.1} parent=1 // loop_exit
      _
    %786 = vsyncpa [#allocation3], 1
    %s787 = scalar_lea.sflag [#allocation3], 1
    %788 = vsyncpa %s787, 1
    %789 = vsyncpa [#allocation4], 1
    %s790 = scalar_lea.sflag [#allocation4], 1
    %791 = vsyncpa %s790, 1

// kernel: tpu_custom_call.1
$region0: #{tpu_custom_call.1}
  #allocation0 [shape = 'u32[]', space=smem, size = 0x4, offset = 0x4, fixed_abs, tag = 'smem constant byte address 0x4 - core index']
  #allocation1 [shape = 'u32[144,128]{1,0:T(1,128)}', space=vmem, size = 0x12000, scoped, tag = 'internal scratch']
  %s0 = inlined_call_operand.hbm [shape: f32[2,16,1024], index: 0, kind: input, shape index: {}]
  %s1 = inlined_call_operand.vmem [shape: bf16[16,16], index: 1, kind: input, shape index: {}]
  %s2 = inlined_call_operand.vmem [shape: f32[16,1], index: 2, kind: input, shape index: {}]
  %s3 = inlined_call_operand.vmem [shape: bf16[16,16], index: 3, kind: input, shape index: {}]
  %s4 = inlined_call_operand.vmem [shape: f32[16,1], index: 4, kind: input, shape index: {}]
  %s5 = inlined_call_operand.hbm [shape: f32[2,16,1024], index: 5, kind: output, shape index: {}]
  %s6 = sld [smem:[#allocation0]]
  $region57: #{tpu_custom_call.1} parent=0
    _
  %s8 = ssub.s32 1, %s6
  %s9 = scalar_select 0, %s8, %s6
  $region1: #{tpu_custom_call.1} parent=0
    #allocation2 [shape = 'u8[131072]{0}', space=vmem, size = 0x20000, scoped, tag = 'input window, operand 0']
    #allocation3 [shape = 's32[2]{0}', space=sflag, size = 0x8, scoped, tag = 'scoped memory for tpu_custom_call.1']
    #allocation4 [shape = 's32[2]{0}', space=sflag, size = 0x8, scoped, tag = 'scoped memory for tpu_custom_call.1']
    #allocation5 [shape = 'u8[131072]{0}', space=vmem, size = 0x20000, scoped, tag = 'output window, operand 0']
    %10 = vsyncpa [#allocation3], 0
    %s11 = scalar_lea.sflag [#allocation3], 1
    %12 = vsyncpa %s11, 0
    %13 = vsyncpa [#allocation4], 0
    %s14 = scalar_lea.sflag [#allocation4], 1
    %15 = vsyncpa %s14, 0
    loop: start=0, step=1, limit=4
    $region2: #{tpu_custom_call.1} parent=1 // loop_pre_header
      _
    $region3: #{tpu_custom_call.1} parent=1 // loop_header
      %s17 = sphi 0, %s21
      %p18 = scmp.ge.s32.totalorder %s17, 4
      %s24 = sphi 0, %s36
      %s25 = sphi 0, %s32
      %s26 = sphi 0, %s24
      %s27 = sphi 0, %s25
      %s28 = sphi 0, %s26
      %s29 = sphi 0, %s27
      %s41 = sphi 0, %s43
      %s44 = sphi 0, %s41
      %s45 = sphi 0, %s44
      %s61 = sphi 0, %s45
      %s65 = sphi 0, %s65
      %s67 = sphi 0, %s65
      %s68 = sphi 0, %s67
      %s82 = sphi 0, %s68
      %s86 = sphi 0, %s86
      %s88 = sphi 0, %s86
      %s89 = sphi 0, %s88
      %s103 = sphi 0, %s89
      %s107 = sphi 0, %s107
      %s109 = sphi 0, %s107
      %s110 = sphi 0, %s109
      %s124 = sphi 0, %s110
      %s128 = sphi 0, %s128
      %s130 = sphi 0, %s128
      %s131 = sphi 0, %s130
      %s145 = sphi 0, %s131
      %s153 = sphi 0, %s155
      %s156 = sphi 0, %s153
      %s157 = sphi 0, %s156
      %s173 = sphi 0, %s157
    $region4: #{tpu_custom_call.1} parent=1 // loop_header_branch
      %20 = sbr.rel (%p18) target = $region8
    $region5: #{tpu_custom_call.1} parent=1 // loop_body
      %s22 = ssub.s32 %s17, 1
      %s23 = ssub.s32 %s17, 2
      %s30 = sadd.s32 1, %s25
      %p31 = scmp.ge.s32.totalorder %s30, 1
      %s32 = scalar_select %p31, 0, %s30
      %s33 = sadd.s32 1, %s24
      %s34 = scalar_select %p31, %s33, %s24
      %p35 = scmp.ge.s32.totalorder %s34, 2
      %s36 = scalar_select %p35, 0, %s34
      %s37 = ssub.s32 %s24, %s36
      %s38 = ssub.s32 %s25, %s32
      %s39 = sor.u32 %s37, %s38
      %p40 = scmp.eq.s32.totalorder %s39, 0
      %s42 = sadd.s32 %s41, 1
      %s43 = scalar_select %p40, %s41, %s42
      %p46 = pneg %p40
      %p47 = scmp.eq.s32.totalorder %s17, 1
      %p48 = por %p46, %p47
      %p49 = scmp.ne.s32.totalorder %s41, %s44
      %p50 = scmp.eq.s32.totalorder %s17, 0
      %p51 = por %p49, %p50
      %p52 = scmp.ne.s32.totalorder %s41, %s44
      %p53 = scmp.eq.s32.totalorder %s22, 1
      %p54 = por %p52, %p53
      %p55 = scmp.ne.s32.totalorder %s44, %s45
      %p56 = scmp.eq.s32.totalorder %s22, 0
      %p57 = por %p55, %p56
      %p58 = scmp.ne.s32.totalorder %s44, %s45
      %p59 = scmp.eq.s32.totalorder %s23, 1
      %p60 = por %p58, %p59
      %p62 = scmp.ne.s32.totalorder %s45, %s61
      %p63 = scmp.eq.s32.totalorder %s23, 0
      %p64 = por %p62, %p63
      %s66 = sadd.s32 %s65, 1
      %p69 = scmp.eq.s32.totalorder %s17, 1
      %p70 = scmp.ne.s32.totalorder %s65, %s67
      %p71 = scmp.eq.s32.totalorder %s17, 0
      %p72 = por %p70, %p71
      %p73 = scmp.ne.s32.totalorder %s65, %s67
      %p74 = scmp.eq.s32.totalorder %s22, 1
      %p75 = por %p73, %p74
      %p76 = scmp.ne.s32.totalorder %s67, %s68
      %p77 = scmp.eq.s32.totalorder %s22, 0
      %p78 = por %p76, %p77
      %p79 = scmp.ne.s32.totalorder %s67, %s68
      %p80 = scmp.eq.s32.totalorder %s23, 1
      %p81 = por %p79, %p80
      %p83 = scmp.ne.s32.totalorder %s68, %s82
      %p84 = scmp.eq.s32.totalorder %s23, 0
      %p85 = por %p83, %p84
      %s87 = sadd.s32 %s86, 1
      %p90 = scmp.eq.s32.totalorder %s17, 1
      %p91 = scmp.ne.s32.totalorder %s86, %s88
      %p92 = scmp.eq.s32.totalorder %s17, 0
      %p93 = por %p91, %p92
      %p94 = scmp.ne.s32.totalorder %s86, %s88
      %p95 = scmp.eq.s32.totalorder %s22, 1
      %p96 = por %p94, %p95
      %p97 = scmp.ne.s32.totalorder %s88, %s89
      %p98 = scmp.eq.s32.totalorder %s22, 0
      %p99 = por %p97, %p98
      %p100 = scmp.ne.s32.totalorder %s88, %s89
      %p101 = scmp.eq.s32.totalorder %s23, 1
      %p102 = por %p100, %p101
      %p104 = scmp.ne.s32.totalorder %s89, %s103
      %p105 = scmp.eq.s32.totalorder %s23, 0
      %p106 = por %p104, %p105
      %s108 = sadd.s32 %s107, 1
      %p111 = scmp.eq.s32.totalorder %s17, 1
      %p112 = scmp.ne.s32.totalorder %s107, %s109
      %p113 = scmp.eq.s32.totalorder %s17, 0
      %p114 = por %p112, %p113
      %p115 = scmp.ne.s32.totalorder %s107, %s109
      %p116 = scmp.eq.s32.totalorder %s22, 1
      %p117 = por %p115, %p116
      %p118 = scmp.ne.s32.totalorder %s109, %s110
      %p119 = scmp.eq.s32.totalorder %s22, 0
      %p120 = por %p118, %p119
      %p121 = scmp.ne.s32.totalorder %s109, %s110
      %p122 = scmp.eq.s32.totalorder %s23, 1
      %p123 = por %p121, %p122
      %p125 = scmp.ne.s32.totalorder %s110, %s124
      %p126 = scmp.eq.s32.totalorder %s23, 0
      %p127 = por %p125, %p126
      %s129 = sadd.s32 %s128, 1
      %p132 = scmp.eq.s32.totalorder %s17, 1
      %p133 = scmp.ne.s32.totalorder %s128, %s130
      %p134 = scmp.eq.s32.totalorder %s17, 0
      %p135 = por %p133, %p134
      %p136 = scmp.ne.s32.totalorder %s128, %s130
      %p137 = scmp.eq.s32.totalorder %s22, 1
      %p138 = por %p136, %p137
      %p139 = scmp.ne.s32.totalorder %s130, %s131
      %p140 = scmp.eq.s32.totalorder %s22, 0
      %p141 = por %p139, %p140
      %p142 = scmp.ne.s32.totalorder %s130, %s131
      %p143 = scmp.eq.s32.totalorder %s23, 1
      %p144 = por %p142, %p143
      %p146 = scmp.ne.s32.totalorder %s131, %s145
      %p147 = scmp.eq.s32.totalorder %s23, 0
      %p148 = por %p146, %p147
      %s149 = ssub.s32 %s24, %s36
      %s150 = ssub.s32 %s25, %s32
      %s151 = sor.u32 %s149, %s150
      %p152 = scmp.eq.s32.totalorder %s151, 0
      %s154 = sadd.s32 %s153, 1
      %s155 = scalar_select %p152, %s153, %s154
      %p158 = pneg %p152
      %p159 = scmp.eq.s32.totalorder %s17, 1
      %p160 = por %p158, %p159
      %p161 = scmp.ne.s32.totalorder %s153, %s156
      %p162 = scmp.eq.s32.totalorder %s17, 0
      %p163 = por %p161, %p162
      %p164 = scmp.ne.s32.totalorder %s153, %s156
      %p165 = scmp.eq.s32.totalorder %s22, 1
      %p166 = por %p164, %p165
      %p167 = scmp.ne.s32.totalorder %s156, %s157
      %p168 = scmp.eq.s32.totalorder %s22, 0
      %p169 = por %p167, %p168
      %p170 = scmp.ne.s32.totalorder %s156, %s157
      %p171 = scmp.eq.s32.totalorder %s23, 1
      %p172 = por %p170, %p171
      %p174 = scmp.ne.s32.totalorder %s157, %s173
      %p175 = scmp.eq.s32.totalorder %s23, 0
      %p176 = por %p174, %p175
      %p177 = scmp.le.s32.totalorder 1, %s17
      %p178 = scmp.lt.s32.totalorder %s17, 3
      %p179 = pnand %p177, %p178
      %p180 = pneg %p179
      // Predicated region
      $region9: #{tpu_custom_call.1} parent=5 // pred_check
        _
      $region10: #{tpu_custom_call.1} parent=5 // pred_check_branch
        %182 = sbr.rel (%p179) target = $region12
      $region11: #{tpu_custom_call.1} parent=5 // pred_region
        %s183 = ssub.s32 %s17, 1
        // Predicated region
        $region13: #{tpu_custom_call.1} parent=11 // pred_check
          %p184 = pneg %p78
        $region14: #{tpu_custom_call.1} parent=11 // pred_check_branch
          %186 = sbr.rel (%p184) target = $region16
        $region15: #{tpu_custom_call.1} parent=11 // pred_region
          _
        $region16: #{tpu_custom_call.1} parent=11 // pred_fallthru
          _
        // Predicated region
        $region17: #{tpu_custom_call.1} parent=11 // pred_check
          %p187 = pneg %p99
        $region18: #{tpu_custom_call.1} parent=11 // pred_check_branch
          %189 = sbr.rel (%p187) target = $region20
        $region19: #{tpu_custom_call.1} parent=11 // pred_region
          _
        $region20: #{tpu_custom_call.1} parent=11 // pred_fallthru
          _
        // Predicated region
        $region21: #{tpu_custom_call.1} parent=11 // pred_check
          %p190 = pneg %p120
        $region22: #{tpu_custom_call.1} parent=11 // pred_check_branch
          %192 = sbr.rel (%p190) target = $region24
        $region23: #{tpu_custom_call.1} parent=11 // pred_region
          _
        $region24: #{tpu_custom_call.1} parent=11 // pred_fallthru
          _
        // Predicated region
        $region25: #{tpu_custom_call.1} parent=11 // pred_check
          %p193 = pneg %p141
        $region26: #{tpu_custom_call.1} parent=11 // pred_check_branch
          %195 = sbr.rel (%p193) target = $region28
        $region27: #{tpu_custom_call.1} parent=11 // pred_region
          _
        $region28: #{tpu_custom_call.1} parent=11 // pred_fallthru
          _
      $region12: #{tpu_custom_call.1} parent=5 // pred_fallthru
        _
      %p196 = scmp.lt.s32.totalorder %s17, 2
      // Predicated region
      $region29: #{tpu_custom_call.1} parent=5 // pred_check
        %p197 = pneg %p196
      $region30: #{tpu_custom_call.1} parent=5 // pred_check_branch
        %199 = sbr.rel (%p197) target = $region32
      $region31: #{tpu_custom_call.1} parent=5 // pred_region
        // Predicated region
        $region33: #{tpu_custom_call.1} parent=31 // pred_check
          %p200 = pneg %p51
        $region34: #{tpu_custom_call.1} parent=31 // pred_check_branch
          %202 = sbr.rel (%p200) target = $region36
        $region35: #{tpu_custom_call.1} parent=31 // pred_region
          %s203 = sand.u32 %s41, 1
          %s204 = scalar_lea.sflag [#allocation3], %s203
          %s205 = sand.u32 %s41, 1
          %s206 = smul.addr %s205, 128
          %s207 = scalar_lea.vmem [#allocation2], %s206
          %s208 = smul.u32 8, %s25
          %s210 = ssub.s32 2048, 2048
          %211 = vsyncadd %s204, %s210
          %s212 = smul.addr %s24, 16
          %s213 = sadd.s32 %s208, %s212
          %s214 = smul.addr %s213, 128
          %s215 = scalar_lea.hbm %s0, %s214
          %s216 = sshll.u32 %s207, 4
          %s217 = int_to_ptr.vmem [resolvable:$true] %s216
          %222 = dma.hbm_to_vmem [thread:$0]  %s215, 2048, %s217, %s204, 1024, 1024, 64
        $region36: #{tpu_custom_call.1} parent=31 // pred_fallthru
          _
      $region32: #{tpu_custom_call.1} parent=5 // pred_fallthru
        _
      %p223 = scmp.le.s32.totalorder 1, %s17
      %p224 = scmp.lt.s32.totalorder %s17, 3
      %p225 = pnand %p223, %p224
      %p226 = pneg %p225
      // Predicated region
      $region37: #{tpu_custom_call.1} parent=5 // pred_check
        _
      $region38: #{tpu_custom_call.1} parent=5 // pred_check_branch
        %228 = sbr.rel (%p225) target = $region40
      $region39: #{tpu_custom_call.1} parent=5 // pred_region
        %s229 = ssub.s32 %s17, 1
        %s230 = sand.u32 %s44, 1
        %s231 = scalar_lea.sflag [#allocation3], %s230
        %s232 = sand.u32 %s44, 1
        %s233 = smul.addr %s232, 128
        %s234 = scalar_lea.vmem [#allocation2], %s233
        // Predicated region
        $region41: #{tpu_custom_call.1} parent=39 // pred_check
          %p235 = pneg %p57
        $region42: #{tpu_custom_call.1} parent=39 // pred_check_branch
          %237 = sbr.rel (%p235) target = $region44
        $region43: #{tpu_custom_call.1} parent=39 // pred_region
          %238 = dma.done %s231, 2048
        $region44: #{tpu_custom_call.1} parent=39 // pred_fallthru
          _
        %s239 = sand.u32 %s44, 1
        %s240 = scalar_lea.sflag [#allocation3], %s239
        %s241 = sand.u32 %s44, 1
        %s242 = smul.addr %s241, 128
        %s243 = scalar_lea.vmem [#allocation2], %s242
        %p244 = pneg %p57
        %p245 = pneg %p54
        %p246 = pneg %p78
        %p247 = pneg %p75
        %p248 = pneg %p99
        %p249 = pneg %p96
        %p250 = pneg %p120
        %p251 = pneg %p117
        %p252 = pneg %p141
        %p253 = pneg %p138
        %p254 = pneg %p169
        %p255 = pneg %p166
        %s256 = sand.u32 %s156, 1
        %s257 = scalar_lea.sflag [#allocation4], %s256
        %s258 = sand.u32 %s156, 1
        %s259 = smul.addr %s258, 128
        %s260 = scalar_lea.vmem [#allocation5], %s259
        %s261 = smul.u32 8, %s27
        %s262 = smul.u32 8, %s27
        %v264 = vld [vmem:[%s1] sm:$0xf]
        %v265 = vld [vmem:[%s1 + $0x4] sm:$0xf]
        %v266 = vld [vmem:[%s3] sm:$0xf]
        %v267 = vld [vmem:[%s3 + $0x4] sm:$0xf]
        %v268 = vld [vmem:[%s2] sm:$0xff]
        %v269 = vld [vmem:[%s2 + $0x8] sm:$0xff]
        %v270 = vld [vmem:[%s4] sm:$0xff]
        %v271 = vld [vmem:[%s4 + $0x8] sm:$0xff]
        %v272 = vld [vmem:[%s234] sm:$0xff]
        %v273 = vld [vmem:[%s234 + $0x8] sm:$0xff]
        %v274 = vld [vmem:[%s234 + $0x10] sm:$0xff]
        %v275 = vld [vmem:[%s234 + $0x18] sm:$0xff]
        %v276 = vld [vmem:[%s234 + $0x20] sm:$0xff]
        %v277 = vld [vmem:[%s234 + $0x28] sm:$0xff]
        %v278 = vld [vmem:[%s234 + $0x30] sm:$0xff]
        %v279 = vld [vmem:[%s234 + $0x38] sm:$0xff]
        %v280 = vld [vmem:[%s234 + $0x40] sm:$0xff]
        %v281 = vld [vmem:[%s234 + $0x48] sm:$0xff]
        %v282 = vld [vmem:[%s234 + $0x50] sm:$0xff]
        %v283 = vld [vmem:[%s234 + $0x58] sm:$0xff]
        %v284 = vld [vmem:[%s234 + $0x60] sm:$0xff]
        %v285 = vld [vmem:[%s234 + $0x68] sm:$0xff]
        %v286 = vld [vmem:[%s234 + $0x70] sm:$0xff]
        %v287 = vld [vmem:[%s234 + $0x78] sm:$0xff]
        %v288 = vpack.c.bf16 %v280, %v272
        %v289 = vpack.c.bf16 %v281, %v273
        %v290 = vpack.c.bf16 %v282, %v274
        %v291 = vpack.c.bf16 %v283, %v275
        %v292 = vpack.c.bf16 %v284, %v276
        %v293 = vpack.c.bf16 %v285, %v277
        %v294 = vpack.c.bf16 %v286, %v278
        %v295 = vpack.c.bf16 %v287, %v279
        %297 = vset.pattern.permute.xlu0 0
        %298 = vperm.xlu0 %297, %v268
        %v299 = vpop.permute.xlu0 %298
        %302 = vset.pattern.permute.xlu0 0
        %303 = vperm.xlu0 %302, %v269
        %v304 = vpop.permute.xlu0 %303
        %v308 = vunpack.c.l.b16 %v264
        %v309 = vunpack.c.l.b16 %v265
        %v310 = vpack.c.b16 %v309, %v308
        %vm311 = vcmask 130048
        %v313 = vsel %vm311, %v310, 0
        %315 = vmatprep.subr.bf16.mxu0 %v289
        %316 = vmatpush1.bf16.msra.mxu0 %v288
        %317 = vmatprep.subr.bf16.mxu0 0
        %318 = vmatpush1.bf16.msra.mxu0 0
        %319 = vmatprep.subr.bf16.mxu0 0
        %320 = vmatpush1.bf16.msra.mxu0 0
        %321 = vmatprep.subr.bf16.mxu0 0
        %322 = vmatpush1.bf16.msra.mxu0 0
        %323 = vmatprep.subr.bf16.mxu0 0
        %324 = vmatpush1.bf16.msra.mxu0 0
        %325 = vmatprep.subr.bf16.mxu0 0
        %326 = vmatpush1.bf16.msra.mxu0 0
        %327 = vmatprep.subr.bf16.mxu0 0
        %328 = vmatpush1.bf16.msra.mxu0 0
        %329 = vmatprep.subr.bf16.mxu0 0
        %330 = vmatpush1.bf16.msra.mxu0 0
        %331 = vmatprep.subr.bf16.mxu0 0
        %332 = vmatpush1.bf16.msra.mxu0 0
        %333 = vmatprep.subr.bf16.mxu0 0
        %334 = vmatpush1.bf16.msra.mxu0 0
        %335 = vmatprep.subr.bf16.mxu0 0
        %336 = vmatpush1.bf16.msra.mxu0 0
        %337 = vmatprep.subr.bf16.mxu0 0
        %338 = vmatpush1.bf16.msra.mxu0 0
        %339 = vmatprep.subr.bf16.mxu0 0
        %340 = vmatpush1.bf16.msra.mxu0 0
        %341 = vmatprep.subr.bf16.mxu0 0
        %342 = vmatpush1.bf16.msra.mxu0 0
        %343 = vmatprep.subr.bf16.mxu0 0
        %344 = vmatpush1.bf16.msra.mxu0 0
        %345 = vmatprep.subr.bf16.mxu0 0
        %346 = vmatpush1.bf16.msra.mxu0 0
        %347 = vmatprep.mubr.bf16.mxu0 0
        %348 = vmatmul.mubr.bf16.gmra.mrb[0].mxu0 %v313
        %v349 = vpop.f32.mrb[0].mxu0
        %v350 = vadd.f32 %v299, %v349
        %v351 = vpop.f32.mrb[0].mxu0
        %v352 = vadd.f32 %v299, %v351
        %v353 = vpop.f32.mrb[0].mxu0
        %v354 = vadd.f32 %v304, %v353
        %v355 = vpop.f32.mrb[0].mxu0
        %v356 = vadd.f32 %v304, %v355
        %357 = vdwg.mxu0
        %358 = vmatprep.subr.bf16.mxu0 %v291
        %359 = vmatpush1.bf16.msra.mxu0 %v290
        %360 = vmatprep.subr.bf16.mxu0 0
        %361 = vmatpush1.bf16.msra.mxu0 0
        %362 = vmatprep.subr.bf16.mxu0 0
        %363 = vmatpush1.bf16.msra.mxu0 0
        %364 = vmatprep.subr.bf16.mxu0 0
        %365 = vmatpush1.bf16.msra.mxu0 0
        %366 = vmatprep.subr.bf16.mxu0 0
        %367 = vmatpush1.bf16.msra.mxu0 0
        %368 = vmatprep.subr.bf16.mxu0 0
        %369 = vmatpush1.bf16.msra.mxu0 0
        %370 = vmatprep.subr.bf16.mxu0 0
        %371 = vmatpush1.bf16.msra.mxu0 0
        %372 = vmatprep.subr.bf16.mxu0 0
        %373 = vmatpush1.bf16.msra.mxu0 0
        %374 = vmatprep.subr.bf16.mxu0 0
        %375 = vmatpush1.bf16.msra.mxu0 0
        %376 = vmatprep.subr.bf16.mxu0 0
        %377 = vmatpush1.bf16.msra.mxu0 0
        %378 = vmatprep.subr.bf16.mxu0 0
        %379 = vmatpush1.bf16.msra.mxu0 0
        %380 = vmatprep.subr.bf16.mxu0 0
        %381 = vmatpush1.bf16.msra.mxu0 0
        %382 = vmatprep.subr.bf16.mxu0 0
        %383 = vmatpush1.bf16.msra.mxu0 0
        %384 = vmatprep.subr.bf16.mxu0 0
        %385 = vmatpush1.bf16.msra.mxu0 0
        %386 = vmatprep.subr.bf16.mxu0 0
        %387 = vmatpush1.bf16.msra.mxu0 0
        %388 = vmatprep.subr.bf16.mxu0 0
        %389 = vmatpush1.bf16.msra.mxu0 0
        %390 = vmatprep.mubr.bf16.mxu0 0
        %391 = vmatmul.mubr.bf16.gmra.mrb[0].mxu0 %v313
        %v392 = vpop.f32.mrb[0].mxu0
        %v393 = vadd.f32 %v299, %v392
        %v394 = vpop.f32.mrb[0].mxu0
        %v395 = vadd.f32 %v299, %v394
        %v396 = vpop.f32.mrb[0].mxu0
        %v397 = vadd.f32 %v304, %v396
        %v398 = vpop.f32.mrb[0].mxu0
        %v399 = vadd.f32 %v304, %v398
        %400 = vdwg.mxu0
        %401 = vmatprep.subr.bf16.mxu0 %v293
        %402 = vmatpush1.bf16.msra.mxu0 %v292
        %403 = vmatprep.subr.bf16.mxu0 0
        %404 = vmatpush1.bf16.msra.mxu0 0
        %405 = vmatprep.subr.bf16.mxu0 0
        %406 = vmatpush1.bf16.msra.mxu0 0
        %407 = vmatprep.subr.bf16.mxu0 0
        %408 = vmatpush1.bf16.msra.mxu0 0
        %409 = vmatprep.subr.bf16.mxu0 0
        %410 = vmatpush1.bf16.msra.mxu0 0
        %411 = vmatprep.subr.bf16.mxu0 0
        %412 = vmatpush1.bf16.msra.mxu0 0
        %413 = vmatprep.subr.bf16.mxu0 0
        %414 = vmatpush1.bf16.msra.mxu0 0
        %415 = vmatprep.subr.bf16.mxu0 0
        %416 = vmatpush1.bf16.msra.mxu0 0
        %417 = vmatprep.subr.bf16.mxu0 0
        %418 = vmatpush1.bf16.msra.mxu0 0
        %419 = vmatprep.subr.bf16.mxu0 0
        %420 = vmatpush1.bf16.msra.mxu0 0
        %421 = vmatprep.subr.bf16.mxu0 0
        %422 = vmatpush1.bf16.msra.mxu0 0
        %423 = vmatprep.subr.bf16.mxu0 0
        %424 = vmatpush1.bf16.msra.mxu0 0
        %425 = vmatprep.subr.bf16.mxu0 0
        %426 = vmatpush1.bf16.msra.mxu0 0
        %427 = vmatprep.subr.bf16.mxu0 0
        %428 = vmatpush1.bf16.msra.mxu0 0
        %429 = vmatprep.subr.bf16.mxu0 0
        %430 = vmatpush1.bf16.msra.mxu0 0
        %431 = vmatprep.subr.bf16.mxu0 0
        %432 = vmatpush1.bf16.msra.mxu0 0
        %433 = vmatprep.mubr.bf16.mxu0 0
        %434 = vmatmul.mubr.bf16.gmra.mrb[0].mxu0 %v313
        %v435 = vpop.f32.mrb[0].mxu0
        %v436 = vadd.f32 %v299, %v435
        %v437 = vpop.f32.mrb[0].mxu0
        %v438 = vadd.f32 %v299, %v437
        %v439 = vpop.f32.mrb[0].mxu0
        %v440 = vadd.f32 %v304, %v439
        %v441 = vpop.f32.mrb[0].mxu0
        %v442 = vadd.f32 %v304, %v441
        %443 = vdwg.mxu0
        %444 = vmatprep.subr.bf16.mxu0 %v295
        %445 = vmatpush1.bf16.msra.mxu0 %v294
        %446 = vmatprep.subr.bf16.mxu0 0
        %447 = vmatpush1.bf16.msra.mxu0 0
        %448 = vmatprep.subr.bf16.mxu0 0
        %449 = vmatpush1.bf16.msra.mxu0 0
        %450 = vmatprep.subr.bf16.mxu0 0
        %451 = vmatpush1.bf16.msra.mxu0 0
        %452 = vmatprep.subr.bf16.mxu0 0
        %453 = vmatpush1.bf16.msra.mxu0 0
        %454 = vmatprep.subr.bf16.mxu0 0
        %455 = vmatpush1.bf16.msra.mxu0 0
        %456 = vmatprep.subr.bf16.mxu0 0
        %457 = vmatpush1.bf16.msra.mxu0 0
        %458 = vmatprep.subr.bf16.mxu0 0
        %459 = vmatpush1.bf16.msra.mxu0 0
        %460 = vmatprep.subr.bf16.mxu0 0
        %461 = vmatpush1.bf16.msra.mxu0 0
        %462 = vmatprep.subr.bf16.mxu0 0
        %463 = vmatpush1.bf16.msra.mxu0 0
        %464 = vmatprep.subr.bf16.mxu0 0
        %465 = vmatpush1.bf16.msra.mxu0 0
        %466 = vmatprep.subr.bf16.mxu0 0
        %467 = vmatpush1.bf16.msra.mxu0 0
        %468 = vmatprep.subr.bf16.mxu0 0
        %469 = vmatpush1.bf16.msra.mxu0 0
        %470 = vmatprep.subr.bf16.mxu0 0
        %471 = vmatpush1.bf16.msra.mxu0 0
        %472 = vmatprep.subr.bf16.mxu0 0
        %473 = vmatpush1.bf16.msra.mxu0 0
        %474 = vmatprep.subr.bf16.mxu0 0
        %475 = vmatpush1.bf16.msra.mxu0 0
        %476 = vmatprep.mubr.bf16.mxu0 0
        %477 = vmatmul.mubr.bf16.gmra.mrb[0].mxu0 %v313
        %v478 = vpop.f32.mrb[0].mxu0
        %v479 = vadd.f32 %v299, %v478
        %v480 = vpop.f32.mrb[0].mxu0
        %v481 = vadd.f32 %v299, %v480
        %v482 = vpop.f32.mrb[0].mxu0
        %v483 = vadd.f32 %v304, %v482
        %v484 = vpop.f32.mrb[0].mxu0
        %v485 = vadd.f32 %v304, %v484
        %486 = vdwg.mxu0
        %v487 = vmax.f32 %v350, 0.0
        %v488 = vmax.f32 %v352, 0.0
        %v489 = vmax.f32 %v393, 0.0
        %v490 = vmax.f32 %v395, 0.0
        %v491 = vmax.f32 %v436, 0.0
        %v492 = vmax.f32 %v438, 0.0
        %v493 = vmax.f32 %v479, 0.0
        %v494 = vmax.f32 %v481, 0.0
        %v495 = vmax.f32 %v354, 0.0
        %v496 = vmax.f32 %v356, 0.0
        %v497 = vmax.f32 %v397, 0.0
        %v498 = vmax.f32 %v399, 0.0
        %v499 = vmax.f32 %v440, 0.0
        %v500 = vmax.f32 %v442, 0.0
        %v501 = vmax.f32 %v483, 0.0
        %v502 = vmax.f32 %v485, 0.0
        %v503 = vpack.c.bf16 %v495, %v487
        %v504 = vpack.c.bf16 %v496, %v488
        %v505 = vpack.c.bf16 %v497, %v489
        %v506 = vpack.c.bf16 %v498, %v490
        %v507 = vpack.c.bf16 %v499, %v491
        %v508 = vpack.c.bf16 %v500, %v492
        %v509 = vpack.c.bf16 %v501, %v493
        %v510 = vpack.c.bf16 %v502, %v494
        %512 = vset.pattern.permute.xlu0 0
        %513 = vperm.xlu0 %512, %v270
        %v514 = vpop.permute.xlu0 %513
        %517 = vset.pattern.permute.xlu0 0
        %518 = vperm.xlu0 %517, %v271
        %v519 = vpop.permute.xlu0 %518
        %v523 = vunpack.c.l.b16 %v266
        %v524 = vunpack.c.l.b16 %v267
        %v525 = vpack.c.b16 %v524, %v523
        %v527 = vsel %vm311, %v525, 0
        %529 = vmatprep.subr.bf16.mxu0 %v504
        %530 = vmatpush1.bf16.msra.mxu0 %v503
        %531 = vmatprep.subr.bf16.mxu0 0
        %532 = vmatpush1.bf16.msra.mxu0 0
        %533 = vmatprep.subr.bf16.mxu0 0
        %534 = vmatpush1.bf16.msra.mxu0 0
        %535 = vmatprep.subr.bf16.mxu0 0
        %536 = vmatpush1.bf16.msra.mxu0 0
        %537 = vmatprep.subr.bf16.mxu0 0
        %538 = vmatpush1.bf16.msra.mxu0 0
        %539 = vmatprep.subr.bf16.mxu0 0
        %540 = vmatpush1.bf16.msra.mxu0 0
        %541 = vmatprep.subr.bf16.mxu0 0
        %542 = vmatpush1.bf16.msra.mxu0 0
        %543 = vmatprep.subr.bf16.mxu0 0
        %544 = vmatpush1.bf16.msra.mxu0 0
        %545 = vmatprep.subr.bf16.mxu0 0
        %546 = vmatpush1.bf16.msra.mxu0 0
        %547 = vmatprep.subr.bf16.mxu0 0
        %548 = vmatpush1.bf16.msra.mxu0 0
        %549 = vmatprep.subr.bf16.mxu0 0
        %550 = vmatpush1.bf16.msra.mxu0 0
        %551 = vmatprep.subr.bf16.mxu0 0
        %552 = vmatpush1.bf16.msra.mxu0 0
        %553 = vmatprep.subr.bf16.mxu0 0
        %554 = vmatpush1.bf16.msra.mxu0 0
        %555 = vmatprep.subr.bf16.mxu0 0
        %556 = vmatpush1.bf16.msra.mxu0 0
        %557 = vmatprep.subr.bf16.mxu0 0
        %558 = vmatpush1.bf16.msra.mxu0 0
        %559 = vmatprep.subr.bf16.mxu0 0
        %560 = vmatpush1.bf16.msra.mxu0 0
        %561 = vmatprep.mubr.bf16.mxu0 0
        %562 = vmatmul.mubr.bf16.gmra.mrb[0].mxu0 %v527
        %v563 = vpop.f32.mrb[0].mxu0
        %v564 = vadd.f32 %v514, %v563
        %v565 = vpop.f32.mrb[0].mxu0
        %v566 = vadd.f32 %v514, %v565
        %v567 = vpop.f32.mrb[0].mxu0
        %v568 = vadd.f32 %v519, %v567
        %v569 = vpop.f32.mrb[0].mxu0
        %v570 = vadd.f32 %v519, %v569
        %571 = vdwg.mxu0
        %572 = vmatprep.subr.bf16.mxu0 %v506
        %573 = vmatpush1.bf16.msra.mxu0 %v505
        %574 = vmatprep.subr.bf16.mxu0 0
        %575 = vmatpush1.bf16.msra.mxu0 0
        %576 = vmatprep.subr.bf16.mxu0 0
        %577 = vmatpush1.bf16.msra.mxu0 0
        %578 = vmatprep.subr.bf16.mxu0 0
        %579 = vmatpush1.bf16.msra.mxu0 0
        %580 = vmatprep.subr.bf16.mxu0 0
        %581 = vmatpush1.bf16.msra.mxu0 0
        %582 = vmatprep.subr.bf16.mxu0 0
        %583 = vmatpush1.bf16.msra.mxu0 0
        %584 = vmatprep.subr.bf16.mxu0 0
        %585 = vmatpush1.bf16.msra.mxu0 0
        %586 = vmatprep.subr.bf16.mxu0 0
        %587 = vmatpush1.bf16.msra.mxu0 0
        %588 = vmatprep.subr.bf16.mxu0 0
        %589 = vmatpush1.bf16.msra.mxu0 0
        %590 = vmatprep.subr.bf16.mxu0 0
        %591 = vmatpush1.bf16.msra.mxu0 0
        %592 = vmatprep.subr.bf16.mxu0 0
        %593 = vmatpush1.bf16.msra.mxu0 0
        %594 = vmatprep.subr.bf16.mxu0 0
        %595 = vmatpush1.bf16.msra.mxu0 0
        %596 = vmatprep.subr.bf16.mxu0 0
        %597 = vmatpush1.bf16.msra.mxu0 0
        %598 = vmatprep.subr.bf16.mxu0 0
        %599 = vmatpush1.bf16.msra.mxu0 0
        %600 = vmatprep.subr.bf16.mxu0 0
        %601 = vmatpush1.bf16.msra.mxu0 0
        %602 = vmatprep.subr.bf16.mxu0 0
        %603 = vmatpush1.bf16.msra.mxu0 0
        %604 = vmatprep.mubr.bf16.mxu0 0
        %605 = vmatmul.mubr.bf16.gmra.mrb[0].mxu0 %v527
        %v606 = vpop.f32.mrb[0].mxu0
        %v607 = vadd.f32 %v514, %v606
        %v608 = vpop.f32.mrb[0].mxu0
        %v609 = vadd.f32 %v514, %v608
        %v610 = vpop.f32.mrb[0].mxu0
        %v611 = vadd.f32 %v519, %v610
        %v612 = vpop.f32.mrb[0].mxu0
        %v613 = vadd.f32 %v519, %v612
        %614 = vdwg.mxu0
        %615 = vmatprep.subr.bf16.mxu0 %v508
        %616 = vmatpush1.bf16.msra.mxu0 %v507
        %617 = vmatprep.subr.bf16.mxu0 0
        %618 = vmatpush1.bf16.msra.mxu0 0
        %619 = vmatprep.subr.bf16.mxu0 0
        %620 = vmatpush1.bf16.msra.mxu0 0
        %621 = vmatprep.subr.bf16.mxu0 0
        %622 = vmatpush1.bf16.msra.mxu0 0
        %623 = vmatprep.subr.bf16.mxu0 0
        %624 = vmatpush1.bf16.msra.mxu0 0
        %625 = vmatprep.subr.bf16.mxu0 0
        %626 = vmatpush1.bf16.msra.mxu0 0
        %627 = vmatprep.subr.bf16.mxu0 0
        %628 = vmatpush1.bf16.msra.mxu0 0
        %629 = vmatprep.subr.bf16.mxu0 0
        %630 = vmatpush1.bf16.msra.mxu0 0
        %631 = vmatprep.subr.bf16.mxu0 0
        %632 = vmatpush1.bf16.msra.mxu0 0
        %633 = vmatprep.subr.bf16.mxu0 0
        %634 = vmatpush1.bf16.msra.mxu0 0
        %635 = vmatprep.subr.bf16.mxu0 0
        %636 = vmatpush1.bf16.msra.mxu0 0
        %637 = vmatprep.subr.bf16.mxu0 0
        %638 = vmatpush1.bf16.msra.mxu0 0
        %639 = vmatprep.subr.bf16.mxu0 0
        %640 = vmatpush1.bf16.msra.mxu0 0
        %641 = vmatprep.subr.bf16.mxu0 0
        %642 = vmatpush1.bf16.msra.mxu0 0
        %643 = vmatprep.subr.bf16.mxu0 0
        %644 = vmatpush1.bf16.msra.mxu0 0
        %645 = vmatprep.subr.bf16.mxu0 0
        %646 = vmatpush1.bf16.msra.mxu0 0
        %647 = vmatprep.mubr.bf16.mxu0 0
        %648 = vmatmul.mubr.bf16.gmra.mrb[0].mxu0 %v527
        %v649 = vpop.f32.mrb[0].mxu0
        %v650 = vadd.f32 %v514, %v649
        %v651 = vpop.f32.mrb[0].mxu0
        %v652 = vadd.f32 %v514, %v651
        %v653 = vpop.f32.mrb[0].mxu0
        %v654 = vadd.f32 %v519, %v653
        %v655 = vpop.f32.mrb[0].mxu0
        %v656 = vadd.f32 %v519, %v655
        %657 = vdwg.mxu0
        %658 = vmatprep.subr.bf16.mxu0 %v510
        %659 = vmatpush1.bf16.msra.mxu0 %v509
        %660 = vmatprep.subr.bf16.mxu0 0
        %661 = vmatpush1.bf16.msra.mxu0 0
        %662 = vmatprep.subr.bf16.mxu0 0
        %663 = vmatpush1.bf16.msra.mxu0 0
        %664 = vmatprep.subr.bf16.mxu0 0
        %665 = vmatpush1.bf16.msra.mxu0 0
        %666 = vmatprep.subr.bf16.mxu0 0
        %667 = vmatpush1.bf16.msra.mxu0 0
        %668 = vmatprep.subr.bf16.mxu0 0
        %669 = vmatpush1.bf16.msra.mxu0 0
        %670 = vmatprep.subr.bf16.mxu0 0
        %671 = vmatpush1.bf16.msra.mxu0 0
        %672 = vmatprep.subr.bf16.mxu0 0
        %673 = vmatpush1.bf16.msra.mxu0 0
        %674 = vmatprep.subr.bf16.mxu0 0
        %675 = vmatpush1.bf16.msra.mxu0 0
        %676 = vmatprep.subr.bf16.mxu0 0
        %677 = vmatpush1.bf16.msra.mxu0 0
        %678 = vmatprep.subr.bf16.mxu0 0
        %679 = vmatpush1.bf16.msra.mxu0 0
        %680 = vmatprep.subr.bf16.mxu0 0
        %681 = vmatpush1.bf16.msra.mxu0 0
        %682 = vmatprep.subr.bf16.mxu0 0
        %683 = vmatpush1.bf16.msra.mxu0 0
        %684 = vmatprep.subr.bf16.mxu0 0
        %685 = vmatpush1.bf16.msra.mxu0 0
        %686 = vmatprep.subr.bf16.mxu0 0
        %687 = vmatpush1.bf16.msra.mxu0 0
        %688 = vmatprep.subr.bf16.mxu0 0
        %689 = vmatpush1.bf16.msra.mxu0 0
        %690 = vmatprep.mubr.bf16.mxu0 0
        %691 = vmatmul.mubr.bf16.gmra.mrb[0].mxu0 %v527
        %v692 = vpop.f32.mrb[0].mxu0
        %v693 = vadd.f32 %v514, %v692
        %v694 = vpop.f32.mrb[0].mxu0
        %v695 = vadd.f32 %v514, %v694
        %v696 = vpop.f32.mrb[0].mxu0
        %v697 = vadd.f32 %v519, %v696
        %v698 = vpop.f32.mrb[0].mxu0
        %v699 = vadd.f32 %v519, %v698
        %700 = vdwg.mxu0
        %v701 = vadd.f32 %v564, %v272
        %v702 = vadd.f32 %v566, %v273
        %v703 = vadd.f32 %v607, %v274
        %v704 = vadd.f32 %v609, %v275
        %v705 = vadd.f32 %v650, %v276
        %v706 = vadd.f32 %v652, %v277
        %v707 = vadd.f32 %v693, %v278
        %v708 = vadd.f32 %v695, %v279
        %v709 = vadd.f32 %v568, %v280
        %v710 = vadd.f32 %v570, %v281
        %v711 = vadd.f32 %v611, %v282
        %v712 = vadd.f32 %v613, %v283
        %v713 = vadd.f32 %v654, %v284
        %v714 = vadd.f32 %v656, %v285
        %v715 = vadd.f32 %v697, %v286
        %v716 = vadd.f32 %v699, %v287
        %v717 = vmax.f32 %v701, 0.0
        %v718 = vmax.f32 %v702, 0.0
        %v719 = vmax.f32 %v703, 0.0
        %v720 = vmax.f32 %v704, 0.0
        %v721 = vmax.f32 %v705, 0.0
        %v722 = vmax.f32 %v706, 0.0
        %v723 = vmax.f32 %v707, 0.0
        %v724 = vmax.f32 %v708, 0.0
        %v725 = vmax.f32 %v709, 0.0
        %v726 = vmax.f32 %v710, 0.0
        %v727 = vmax.f32 %v711, 0.0
        %v728 = vmax.f32 %v712, 0.0
        %v729 = vmax.f32 %v713, 0.0
        %v730 = vmax.f32 %v714, 0.0
        %v731 = vmax.f32 %v715, 0.0
        %v732 = vmax.f32 %v716, 0.0
        %733 = vst [vmem:[%s260] sm:$0xff] %v717
        %734 = vst [vmem:[%s260 + $0x8] sm:$0xff] %v718
        %735 = vst [vmem:[%s260 + $0x10] sm:$0xff] %v719
        %736 = vst [vmem:[%s260 + $0x18] sm:$0xff] %v720
        %737 = vst [vmem:[%s260 + $0x20] sm:$0xff] %v721
        %738 = vst [vmem:[%s260 + $0x28] sm:$0xff] %v722
        %739 = vst [vmem:[%s260 + $0x30] sm:$0xff] %v723
        %740 = vst [vmem:[%s260 + $0x38] sm:$0xff] %v724
        %741 = vst [vmem:[%s260 + $0x40] sm:$0xff] %v725
        %742 = vst [vmem:[%s260 + $0x48] sm:$0xff] %v726
        %743 = vst [vmem:[%s260 + $0x50] sm:$0xff] %v727
        %744 = vst [vmem:[%s260 + $0x58] sm:$0xff] %v728
        %745 = vst [vmem:[%s260 + $0x60] sm:$0xff] %v729
        %746 = vst [vmem:[%s260 + $0x68] sm:$0xff] %v730
        %747 = vst [vmem:[%s260 + $0x70] sm:$0xff] %v731
        %748 = vst [vmem:[%s260 + $0x78] sm:$0xff] %v732
        %s749 = sand.u32 %s156, 1
        %s750 = scalar_lea.sflag [#allocation4], %s749
        %s751 = sand.u32 %s156, 1
        %s752 = smul.addr %s751, 128
        %s753 = scalar_lea.vmem [#allocation5], %s752
        // Predicated region
        $region45: #{tpu_custom_call.1} parent=39 // pred_check
          %p754 = pneg %p166
        $region46: #{tpu_custom_call.1} parent=39 // pred_check_branch
          %756 = sbr.rel (%p754) target = $region48
        $region47: #{tpu_custom_call.1} parent=39 // pred_region
          %s757 = smul.u32 8, %s27
          %s759 = ssub.s32 2048, 2048
          %760 = vsyncadd %s750, %s759
          %s761 = smul.addr %s26, 16
          %s762 = sadd.s32 %s757, %s761
          %s763 = smul.addr %s762, 128
          %s764 = scalar_lea.hbm %s5, %s763
          %s765 = sshll.u32 %s753, 4
          %s766 = int_to_ptr.vmem [resolvable:$true] %s765
          %771 = dma.vmem_to_hbm [thread:$0]  %s766, 2048, %s764, %s750, 1024, 1024, 64
        $region48: #{tpu_custom_call.1} parent=39 // pred_fallthru
          _
      $region40: #{tpu_custom_call.1} parent=5 // pred_fallthru
        _
      %p772 = scmp.le.s32.totalorder 2, %s17
      // Predicated region
      $region49: #{tpu_custom_call.1} parent=5 // pred_check
        %p773 = pneg %p772
      $region50: #{tpu_custom_call.1} parent=5 // pred_check_branch
        %775 = sbr.rel (%p773) target = $region52
      $region51: #{tpu_custom_call.1} parent=5 // pred_region
        %s776 = ssub.s32 %s17, 2
        // Predicated region
        $region53: #{tpu_custom_call.1} parent=51 // pred_check
          %p777 = pneg %p172
        $region54: #{tpu_custom_call.1} parent=51 // pred_check_branch
          %779 = sbr.rel (%p777) target = $region56
        $region55: #{tpu_custom_call.1} parent=51 // pred_region
          %s780 = sand.u32 %s157, 1
          %s781 = scalar_lea.sflag [#allocation4], %s780
          %s782 = sand.u32 %s157, 1
          %s783 = smul.addr %s782, 128
          %s784 = scalar_lea.vmem [#allocation5], %s783
          %785 = dma.done %s781, 2048
        $region56: #{tpu_custom_call.1} parent=51 // pred_fallthru
          _
      $region52: #{tpu_custom_call.1} parent=5 // pred_fallthru
        _
    $region6: #{tpu_custom_call.1} parent=1 // loop_footer
      %s21 = sadd.s32 1, %s17
    $region7: #{tpu_custom_call.1} parent=1 // loop_footer_branch
      %16 = sbr.rel target = $region3
    $region8: #{tpu_custom_call.1} parent=1 // loop_exit
      _
    %786 = vsyncpa [#allocation3], 1
    %s787 = scalar_lea.sflag [#allocation3], 1
    %788 = vsyncpa %s787, 1
    %789 = vsyncpa [#allocation4], 1
    %s790 = scalar_lea.sflag [#allocation4], 1
    %791 = vsyncpa %s790, 1

</llo_original>
